<compile_context>
chip_gen: v7x
topology: tpu7x:2x2x1
jax: 0.10.0
libtpu: 0.0.40
codegen_flags: <defaults>
</compile_context>

<pallas_src>
import jax
import jax.numpy as jnp
from jax import lax
from jax.experimental import pallas as pl
from jax.experimental.pallas import tpu as pltpu


def gru_encoder_kernel(x_ref, wih_ref, whh_ref, bgi_ref, bhn_ref, wfc_ref, bfc_ref,
                       out_ref, hid_ref, gi_scr):
    """Whole-sequence GRU for one (8-row) batch block.

    x_ref   : (T, Bb, Ep)   padded embedded inputs
    wih_ref : (Ep, 3*Hp)    W_ih^T, gate-wise padded [r|z|n]
    whh_ref : (Hp, 3*Hp)    W_hh^T, gate-wise padded [r|z|n]
    bgi_ref : (1, 3*Hp)     b_ih + [b_hr, b_hz, 0]  (folded into input proj)
    bhn_ref : (1, Hp)       b_hn (must stay inside the r*(...) term)
    wfc_ref : (Hp, Hp)      fc_hidden weight^T
    bfc_ref : (1, Hp)       fc_hidden bias
    out_ref : (T, Bb, Hp)   GRU outputs
    hid_ref : (1, Bb, Hp)   fc_hidden(h_T)
    gi_scr  : (T*Bb, 3*Hp)  VMEM scratch for the precomputed input projection
    """
    T, Bb, Ep = x_ref.shape
    Hp = whh_ref.shape[0]

    # ---- Hoisted input projection: one large MXU matmul over all time steps ----
    wih = wih_ref[...]
    x_all = x_ref[...].reshape(T * Bb, Ep)
    gi_all = jnp.dot(x_all.astype(wih.dtype), wih,
                     preferred_element_type=jnp.float32) + bgi_ref[...]
    gi_scr[...] = gi_all  # keep gates in f32 VMEM for the recurrence

    whh = whh_ref[...]
    b_hn = bhn_ref[...]  # (1, Hp)

    def step(t, h):
        start = pl.multiple_of(t * Bb, Bb)
        gi = gi_scr[pl.ds(start, Bb), :]                       # (Bb, 3Hp)
        gh = jnp.dot(h.astype(whh.dtype), whh,
                     preferred_element_type=jnp.float32)       # (Bb, 3Hp)
        # PyTorch gate order [r, z, n]; all slice boundaries are 128-aligned.
        r = jax.nn.sigmoid(gi[:, 0:Hp] + gh[:, 0:Hp])
        z = jax.nn.sigmoid(gi[:, Hp:2 * Hp] + gh[:, Hp:2 * Hp])
        n = jnp.tanh(gi[:, 2 * Hp:] + r * (gh[:, 2 * Hp:] + b_hn))
        h_new = (1.0 - z) * n + z * h
        out_ref[t] = h_new.astype(out_ref.dtype)
        return h_new

    h0 = jnp.zeros((Bb, Hp), jnp.float32)
    h_last = lax.fori_loop(0, T, step, h0, unroll=(T <= 32))

    # fc_hidden on the final hidden state (reshape_hidden_for_linear is a no-op
    # reshape for a single-layer GRU: (1,B,H) -> (1,B,H)).
    wfc = wfc_ref[...]
    hid = jnp.dot(h_last.astype(wfc.dtype), wfc,
                  preferred_element_type=jnp.float32) + bfc_ref[...]
    hid_ref[0] = hid.astype(hid_ref.dtype)


def _round_up(x, m):
    return ((x + m - 1) // m) * m


def _pad_gates_cols(w, h, hp):
    """Pad each of the 3 stacked gate blocks [r|z|n] on the last axis from h to hp."""
    parts = []
    for g in range(3):
        blk = w[..., g * h:(g + 1) * h]
        pad = [(0, 0)] * (w.ndim - 1) + [(0, hp - h)]
        parts.append(jnp.pad(blk, pad))
    return jnp.concatenate(parts, axis=-1)


def code_sequence_encoder_pallas(x_ids, params, *, compute_dtype=jnp.float32):
    """x_ids: (T, B) int32 token ids. Returns (outputs (T,B,H), hidden (1,B,H)).

    compute_dtype=jnp.bfloat16 casts matmul operands to bf16 (v6e/v7x MXU native)
    while keeping f32 accumulation and f32 gate math.
    """
    emb_tbl = params["embedding"]      # (V, E)
    wih_T = params["w_ih_T"]           # (E, 3H)
    whh_T = params["w_hh_T"]           # (H, 3H)
    b_ih = params["b_ih"]              # (1, 3H)
    b_hh = params["b_hh"]              # (1, 3H)
    wfc_T = params["w_fc_T"]           # (H, H)
    b_fc = params["b_fc"]              # (1, H)

    T, B = x_ids.shape
    E = emb_tbl.shape[1]
    H = wfc_T.shape[0]

    B_BLK = 8                          # one sublane tile per batch block
    Bp = _round_up(max(B, 1), B_BLK)
    Ep = _round_up(E, 128)
    Hp = _round_up(H, 128)

    # Embedding gather + dropout (identity at inference) -- plain-JAX glue.
    # TODO(synk): training-mode dropout masking is not implemented in the kernel.
    emb = emb_tbl[x_ids]                                              # (T, B, E)
    emb = jnp.pad(emb, ((0, 0), (0, Bp - B), (0, Ep - E))).astype(compute_dtype)

    # Gate-wise, (8,128)-aligned padding of the stacked [r|z|n] parameters.
    wih_p = jnp.pad(_pad_gates_cols(wih_T, H, Hp),
                    ((0, Ep - E), (0, 0))).astype(compute_dtype)
    whh_p = jnp.pad(_pad_gates_cols(whh_T, H, Hp),
                    ((0, Hp - H), (0, 0))).astype(compute_dtype)

    # Fold b_ih + (b_hh for r,z gates) into the precomputed input projection.
    b_hh_r, b_hh_z, b_hh_n = b_hh[:, :H], b_hh[:, H:2 * H], b_hh[:, 2 * H:]
    b_gi = _pad_gates_cols(
        b_ih + jnp.concatenate([b_hh_r, b_hh_z, jnp.zeros_like(b_hh_n)], axis=-1),
        H, Hp).astype(jnp.float32)                                    # (1, 3Hp)
    b_hn = jnp.pad(b_hh_n, ((0, 0), (0, Hp - H))).astype(jnp.float32)  # (1, Hp)

    wfc_p = jnp.pad(wfc_T, ((0, Hp - H), (0, Hp - H))).astype(compute_dtype)
    bfc_p = jnp.pad(b_fc, ((0, 0), (0, Hp - H))).astype(jnp.float32)

    n_b = Bp // B_BLK   # batch blocks; >1 shards across v7x's 2 TensorCores

    outputs, hidden = pl.pallas_call(
        gru_encoder_kernel,
        out_shape=(
            jax.ShapeDtypeStruct((T, Bp, Hp), jnp.float32),
            jax.ShapeDtypeStruct((1, Bp, Hp), jnp.float32),
        ),
        grid=(n_b,),
        in_specs=[
            pl.BlockSpec((T, B_BLK, Ep), lambda b: (0, b, 0)),   # embedded inputs
            pl.BlockSpec((Ep, 3 * Hp), lambda b: (0, 0)),        # W_ih^T
            pl.BlockSpec((Hp, 3 * Hp), lambda b: (0, 0)),        # W_hh^T
            pl.BlockSpec((1, 3 * Hp), lambda b: (0, 0)),         # folded input bias
            pl.BlockSpec((1, Hp), lambda b: (0, 0)),             # b_hn
            pl.BlockSpec((Hp, Hp), lambda b: (0, 0)),            # W_fc^T
            pl.BlockSpec((1, Hp), lambda b: (0, 0)),             # b_fc
        ],
        out_specs=(
            pl.BlockSpec((T, B_BLK, Hp), lambda b: (0, b, 0)),   # GRU outputs
            pl.BlockSpec((1, B_BLK, Hp), lambda b: (0, b, 0)),   # fc_hidden(h_T)
        ),
        scratch_shapes=[pltpu.VMEM((T * B_BLK, 3 * Hp), jnp.float32)],
        compiler_params=pltpu.CompilerParams(
            dimension_semantics=("parallel",)),  # batch blocks are independent
    )(emb, wih_p, whh_p, b_gi, b_hn, wfc_p, bfc_p)

    return outputs[:, :B, :H], hidden[:, :B, :H]


def reference_jax(x_ids, params):
    """Pure-JAX reference for correctness (lax.scan GRU)."""
    emb = params["embedding"][x_ids]
    H = params["w_fc_T"].shape[0]
    B = emb.shape[1]

    def step(h, x_t):
        gi = x_t @ params["w_ih_T"] + params["b_ih"]
        gh = h @ params["w_hh_T"] + params["b_hh"]
        i_r, i_z, i_n = gi[:, :H], gi[:, H:2 * H], gi[:, 2 * H:]
        h_r, h_z, h_n = gh[:, :H], gh[:, H:2 * H], gh[:, 2 * H:]
        r = jax.nn.sigmoid(i_r + h_r)
        z = jax.nn.sigmoid(i_z + h_z)
        n = jnp.tanh(i_n + r * h_n)
        h_new = (1.0 - z) * n + z * h
        return h_new, h_new

    h0 = jnp.zeros((B, H), jnp.float32)
    h_last, outs = lax.scan(step, h0, emb)
    hidden = (h_last @ params["w_fc_T"] + params["b_fc"])[None]
    return outs, hidden


def make_params(key, vocab_size, embedding_size, hidden_size):
    ks = jax.random.split(key, 7)
    s = 0.1
    return {
        "embedding": jax.random.normal(ks[0], (vocab_size, embedding_size), jnp.float32) * s,
        "w_ih_T": jax.random.normal(ks[1], (embedding_size, 3 * hidden_size), jnp.float32) * s,
        "w_hh_T": jax.random.normal(ks[2], (hidden_size, 3 * hidden_size), jnp.float32) * s,
        "b_ih": jax.random.normal(ks[3], (1, 3 * hidden_size), jnp.float32) * s,
        "b_hh": jax.random.normal(ks[4], (1, 3 * hidden_size), jnp.float32) * s,
        "w_fc_T": jax.random.normal(ks[5], (hidden_size, hidden_size), jnp.float32) * s,
        "b_fc": jax.random.normal(ks[6], (1, hidden_size), jnp.float32) * s,
    }


if __name__ == "__main__":
    T, B = 8, 2                 # seq_len, batch
    VOCAB, E, H = 50, 32, 32    # vocab, embedding_size, hidden_size

    key = jax.random.PRNGKey(0)
    k_param, k_ids = jax.random.split(key)
    params = make_params(k_param, VOCAB, E, H)
    x_ids = jax.random.randint(k_ids, (T, B), 0, VOCAB, dtype=jnp.int32)

    outputs, hidden = code_sequence_encoder_pallas(x_ids, params)
    jax.block_until_ready((outputs, hidden))

    ref_out, ref_hid = reference_jax(x_ids, params)
    assert outputs.shape == (T, B, H) and hidden.shape == (1, B, H)
    assert jnp.allclose(outputs, ref_out, atol=1e-5, rtol=1e-5)
    assert jnp.allclose(hidden, ref_hid, atol=1e-5, rtol=1e-5)

    print("KERNEL_OK")
</pallas_src>

<mosaic_0001>
module attributes {stable_mosaic.version = 11 : i64} {
  func.func @gru_encoder_kernel(%arg0: i32, %arg1: memref<8x8x128xf32, #tpu.memory_space<vmem>>, %arg2: memref<128x384xf32, #tpu.memory_space<vmem>>, %arg3: memref<128x384xf32, #tpu.memory_space<vmem>>, %arg4: memref<1x384xf32, #tpu.memory_space<vmem>>, %arg5: memref<1x128xf32, #tpu.memory_space<vmem>>, %arg6: memref<128x128xf32, #tpu.memory_space<vmem>>, %arg7: memref<1x128xf32, #tpu.memory_space<vmem>>, %arg8: memref<8x8x128xf32, #tpu.memory_space<vmem>>, %arg9: memref<1x8x128xf32, #tpu.memory_space<vmem>>, %arg10: memref<64x384xf32, #tpu.memory_space<vmem>>) attributes {dimension_semantics = [#tpu.dimension_semantics<parallel>], iteration_bounds = array<i64: 1>, scalar_prefetch = 0 : i64, scratch_operands = 1 : i64, tpu.core_type = #tpu.core_type<tc>, window_params = [{transform_indices = @transform_0, window_bounds = array<i64: 8, 8, 128>}, {pipeline_mode = #tpu.pipeline_mode<synchronous>, transform_indices = @transform_1, window_bounds = array<i64: 128, 384>}, {pipeline_mode = #tpu.pipeline_mode<synchronous>, transform_indices = @transform_2, window_bounds = array<i64: 128, 384>}, {pipeline_mode = #tpu.pipeline_mode<synchronous>, transform_indices = @transform_3, window_bounds = array<i64: 1, 384>}, {pipeline_mode = #tpu.pipeline_mode<synchronous>, transform_indices = @transform_4, window_bounds = array<i64: 1, 128>}, {pipeline_mode = #tpu.pipeline_mode<synchronous>, transform_indices = @transform_5, window_bounds = array<i64: 128, 128>}, {pipeline_mode = #tpu.pipeline_mode<synchronous>, transform_indices = @transform_6, window_bounds = array<i64: 1, 128>}, {transform_indices = @transform_7, window_bounds = array<i64: 8, 8, 128>}, {transform_indices = @transform_8, window_bounds = array<i64: 1, 8, 128>}]} {
    %c0 = arith.constant 0 : index
    %c0_0 = arith.constant 0 : index
    %0 = vector.load %arg2[%c0, %c0_0] : memref<128x384xf32, #tpu.memory_space<vmem>>, vector<128x384xf32>
    %c0_1 = arith.constant 0 : index
    %c0_2 = arith.constant 0 : index
    %c0_3 = arith.constant 0 : index
    %1 = vector.load %arg1[%c0_1, %c0_2, %c0_3] : memref<8x8x128xf32, #tpu.memory_space<vmem>>, vector<8x8x128xf32>
    %2 = vector.shape_cast %1 : vector<8x8x128xf32> to vector<64x128xf32>
    %cst = arith.constant dense<0.000000e+00> : vector<64x384xf32>
    %3 = tpu.matmul %2, %0, %cst {dimension_numbers = #tpu.dot_dimension_numbers<[1], [0], [0], [1], [0, 0, 1, 1], [], []>} : vector<64x128xf32>, vector<128x384xf32>, vector<64x384xf32> -> vector<64x384xf32>
    %c0_4 = arith.constant 0 : index
    %c0_5 = arith.constant 0 : index
    %4 = vector.load %arg4[%c0_4, %c0_5] : memref<1x384xf32, #tpu.memory_space<vmem>>, vector<1x384xf32>
    %5 = vector.broadcast %4 : vector<1x384xf32> to vector<64x384xf32>
    %6 = arith.addf %3, %5 : vector<64x384xf32>
    %c0_6 = arith.constant 0 : index
    %c0_7 = arith.constant 0 : index
    %7 = vector.load %arg10[%c0_6, %c0_7] : memref<64x384xf32, #tpu.memory_space<vmem>>, vector<64x384xf32>
    tpu.vector_store %arg10[%c0_6, %c0_7], %6 {strides = array<i32>} : memref<64x384xf32, #tpu.memory_space<vmem>>, vector<64x384xf32>,
    %c0_8 = arith.constant 0 : index
    %c0_9 = arith.constant 0 : index
    %8 = vector.load %arg3[%c0_8, %c0_9] : memref<128x384xf32, #tpu.memory_space<vmem>>, vector<128x384xf32>
    %c0_10 = arith.constant 0 : index
    %c0_11 = arith.constant 0 : index
    %9 = vector.load %arg5[%c0_10, %c0_11] : memref<1x128xf32, #tpu.memory_space<vmem>>, vector<1x128xf32>
    %cst_12 = arith.constant 0.000000e+00 : f32
    %10 = vector.broadcast %cst_12 : f32 to vector<8x128xf32>
    %c0_i32 = arith.constant 0 : i32
    %c8_i32 = arith.constant 8 : i32
    %11 = arith.muli %c0_i32, %c8_i32 : i32
    %12 = tpu.assume_multiple %11, 8 : i32
    %13 = arith.index_cast %12 : i32 to index
    %c0_13 = arith.constant 0 : index
    %14 = vector.load %arg10[%13, %c0_13] : memref<64x384xf32, #tpu.memory_space<vmem>>, vector<8x384xf32>
    %cst_14 = arith.constant dense<0.000000e+00> : vector<8x384xf32>
    %15 = tpu.matmul %10, %8, %cst_14 {dimension_numbers = #tpu.dot_dimension_numbers<[1], [0], [0], [1], [0, 0, 1, 1], [], []>} : vector<8x128xf32>, vector<128x384xf32>, vector<8x384xf32> -> vector<8x384xf32>
    %16 = vector.extract_strided_slice %14 {offsets = [0, 0], sizes = [8, 128], strides = [1, 1]} : vector<8x384xf32> to vector<8x128xf32>
    %17 = vector.extract_strided_slice %15 {offsets = [0, 0], sizes = [8, 128], strides = [1, 1]} : vector<8x384xf32> to vector<8x128xf32>
    %18 = arith.addf %16, %17 : vector<8x128xf32>
    %19 = arith.negf %18 : vector<8x128xf32>
    %20 = math.exp %19 : vector<8x128xf32>
    %cst_15 = arith.constant 1.000000e+00 : f32
    %21 = vector.broadcast %cst_15 : f32 to vector<8x128xf32>
    %22 = arith.addf %21, %20 : vector<8x128xf32>
    %23 = arith.divf %21, %22 : vector<8x128xf32>
    %24 = vector.extract_strided_slice %14 {offsets = [0, 128], sizes = [8, 128], strides = [1, 1]} : vector<8x384xf32> to vector<8x128xf32>
    %25 = vector.extract_strided_slice %15 {offsets = [0, 128], sizes = [8, 128], strides = [1, 1]} : vector<8x384xf32> to vector<8x128xf32>
    %26 = arith.addf %24, %25 : vector<8x128xf32>
    %27 = arith.negf %26 : vector<8x128xf32>
    %28 = math.exp %27 : vector<8x128xf32>
    %cst_16 = arith.constant 1.000000e+00 : f32
    %29 = vector.broadcast %cst_16 : f32 to vector<8x128xf32>
    %30 = arith.addf %29, %28 : vector<8x128xf32>
    %31 = arith.divf %29, %30 : vector<8x128xf32>
    %32 = vector.extract_strided_slice %14 {offsets = [0, 256], sizes = [8, 128], strides = [1, 1]} : vector<8x384xf32> to vector<8x128xf32>
    %33 = vector.extract_strided_slice %15 {offsets = [0, 256], sizes = [8, 128], strides = [1, 1]} : vector<8x384xf32> to vector<8x128xf32>
    %34 = vector.broadcast %9 : vector<1x128xf32> to vector<8x128xf32>
    %35 = arith.addf %33, %34 : vector<8x128xf32>
    %36 = arith.mulf %23, %35 : vector<8x128xf32>
    %37 = arith.addf %32, %36 : vector<8x128xf32>
    %38 = math.tanh %37 : vector<8x128xf32>
    %cst_17 = arith.constant 1.000000e+00 : f32
    %39 = vector.broadcast %cst_17 : f32 to vector<8x128xf32>
    %40 = arith.subf %39, %31 : vector<8x128xf32>
    %41 = arith.mulf %40, %38 : vector<8x128xf32>
    %42 = arith.mulf %31, %10 : vector<8x128xf32>
    %43 = arith.addf %41, %42 : vector<8x128xf32>
    %44 = arith.index_cast %c0_i32 : i32 to index
    %c0_18 = arith.constant 0 : index
    %c0_19 = arith.constant 0 : index
    %45 = vector.load %arg8[%44, %c0_18, %c0_19] : memref<8x8x128xf32, #tpu.memory_space<vmem>>, vector<1x8x128xf32>
    %46 = vector.shape_cast %45 : vector<1x8x128xf32> to vector<8x128xf32>
    %47 = vector.shape_cast %43 : vector<8x128xf32> to vector<1x8x128xf32>
    tpu.vector_store %arg8[%44, %c0_18, %c0_19], %47 {strides = array<i32>} : memref<8x8x128xf32, #tpu.memory_space<vmem>>, vector<1x8x128xf32>,
    %c1_i32 = arith.constant 1 : i32
    %c8_i32_20 = arith.constant 8 : i32
    %48 = arith.muli %c1_i32, %c8_i32_20 : i32
    %49 = tpu.assume_multiple %48, 8 : i32
    %50 = arith.index_cast %49 : i32 to index
    %c0_21 = arith.constant 0 : index
    %51 = vector.load %arg10[%50, %c0_21] : memref<64x384xf32, #tpu.memory_space<vmem>>, vector<8x384xf32>
    %cst_22 = arith.constant dense<0.000000e+00> : vector<8x384xf32>
    %52 = tpu.matmul %43, %8, %cst_22 {dimension_numbers = #tpu.dot_dimension_numbers<[1], [0], [0], [1], [0, 0, 1, 1], [], []>} : vector<8x128xf32>, vector<128x384xf32>, vector<8x384xf32> -> vector<8x384xf32>
    %53 = vector.extract_strided_slice %51 {offsets = [0, 0], sizes = [8, 128], strides = [1, 1]} : vector<8x384xf32> to vector<8x128xf32>
    %54 = vector.extract_strided_slice %52 {offsets = [0, 0], sizes = [8, 128], strides = [1, 1]} : vector<8x384xf32> to vector<8x128xf32>
    %55 = arith.addf %53, %54 : vector<8x128xf32>
    %56 = arith.negf %55 : vector<8x128xf32>
    %57 = math.exp %56 : vector<8x128xf32>
    %cst_23 = arith.constant 1.000000e+00 : f32
    %58 = vector.broadcast %cst_23 : f32 to vector<8x128xf32>
    %59 = arith.addf %58, %57 : vector<8x128xf32>
    %60 = arith.divf %58, %59 : vector<8x128xf32>
    %61 = vector.extract_strided_slice %51 {offsets = [0, 128], sizes = [8, 128], strides = [1, 1]} : vector<8x384xf32> to vector<8x128xf32>
    %62 = vector.extract_strided_slice %52 {offsets = [0, 128], sizes = [8, 128], strides = [1, 1]} : vector<8x384xf32> to vector<8x128xf32>
    %63 = arith.addf %61, %62 : vector<8x128xf32>
    %64 = arith.negf %63 : vector<8x128xf32>
    %65 = math.exp %64 : vector<8x128xf32>
    %cst_24 = arith.constant 1.000000e+00 : f32
    %66 = vector.broadcast %cst_24 : f32 to vector<8x128xf32>
    %67 = arith.addf %66, %65 : vector<8x128xf32>
    %68 = arith.divf %66, %67 : vector<8x128xf32>
    %69 = vector.extract_strided_slice %51 {offsets = [0, 256], sizes = [8, 128], strides = [1, 1]} : vector<8x384xf32> to vector<8x128xf32>
    %70 = vector.extract_strided_slice %52 {offsets = [0, 256], sizes = [8, 128], strides = [1, 1]} : vector<8x384xf32> to vector<8x128xf32>
    %71 = vector.broadcast %9 : vector<1x128xf32> to vector<8x128xf32>
    %72 = arith.addf %70, %71 : vector<8x128xf32>
    %73 = arith.mulf %60, %72 : vector<8x128xf32>
    %74 = arith.addf %69, %73 : vector<8x128xf32>
    %75 = math.tanh %74 : vector<8x128xf32>
    %cst_25 = arith.constant 1.000000e+00 : f32
    %76 = vector.broadcast %cst_25 : f32 to vector<8x128xf32>
    %77 = arith.subf %76, %68 : vector<8x128xf32>
    %78 = arith.mulf %77, %75 : vector<8x128xf32>
    %79 = arith.mulf %68, %43 : vector<8x128xf32>
    %80 = arith.addf %78, %79 : vector<8x128xf32>
    %81 = arith.index_cast %c1_i32 : i32 to index
    %c0_26 = arith.constant 0 : index
    %c0_27 = arith.constant 0 : index
    %82 = vector.load %arg8[%81, %c0_26, %c0_27] : memref<8x8x128xf32, #tpu.memory_space<vmem>>, vector<1x8x128xf32>
    %83 = vector.shape_cast %82 : vector<1x8x128xf32> to vector<8x128xf32>
    %84 = vector.shape_cast %80 : vector<8x128xf32> to vector<1x8x128xf32>
    tpu.vector_store %arg8[%81, %c0_26, %c0_27], %84 {strides = array<i32>} : memref<8x8x128xf32, #tpu.memory_space<vmem>>, vector<1x8x128xf32>,
    %c2_i32 = arith.constant 2 : i32
    %c8_i32_28 = arith.constant 8 : i32
    %85 = arith.muli %c2_i32, %c8_i32_28 : i32
    %86 = tpu.assume_multiple %85, 8 : i32
    %87 = arith.index_cast %86 : i32 to index
    %c0_29 = arith.constant 0 : index
    %88 = vector.load %arg10[%87, %c0_29] : memref<64x384xf32, #tpu.memory_space<vmem>>, vector<8x384xf32>
    %cst_30 = arith.constant dense<0.000000e+00> : vector<8x384xf32>
    %89 = tpu.matmul %80, %8, %cst_30 {dimension_numbers = #tpu.dot_dimension_numbers<[1], [0], [0], [1], [0, 0, 1, 1], [], []>} : vector<8x128xf32>, vector<128x384xf32>, vector<8x384xf32> -> vector<8x384xf32>
    %90 = vector.extract_strided_slice %88 {offsets = [0, 0], sizes = [8, 128], strides = [1, 1]} : vector<8x384xf32> to vector<8x128xf32>
    %91 = vector.extract_strided_slice %89 {offsets = [0, 0], sizes = [8, 128], strides = [1, 1]} : vector<8x384xf32> to vector<8x128xf32>
    %92 = arith.addf %90, %91 : vector<8x128xf32>
    %93 = arith.negf %92 : vector<8x128xf32>
    %94 = math.exp %93 : vector<8x128xf32>
    %cst_31 = arith.constant 1.000000e+00 : f32
    %95 = vector.broadcast %cst_31 : f32 to vector<8x128xf32>
    %96 = arith.addf %95, %94 : vector<8x128xf32>
    %97 = arith.divf %95, %96 : vector<8x128xf32>
    %98 = vector.extract_strided_slice %88 {offsets = [0, 128], sizes = [8, 128], strides = [1, 1]} : vector<8x384xf32> to vector<8x128xf32>
    %99 = vector.extract_strided_slice %89 {offsets = [0, 128], sizes = [8, 128], strides = [1, 1]} : vector<8x384xf32> to vector<8x128xf32>
    %100 = arith.addf %98, %99 : vector<8x128xf32>
    %101 = arith.negf %100 : vector<8x128xf32>
    %102 = math.exp %101 : vector<8x128xf32>
    %cst_32 = arith.constant 1.000000e+00 : f32
    %103 = vector.broadcast %cst_32 : f32 to vector<8x128xf32>
    %104 = arith.addf %103, %102 : vector<8x128xf32>
    %105 = arith.divf %103, %104 : vector<8x128xf32>
    %106 = vector.extract_strided_slice %88 {offsets = [0, 256], sizes = [8, 128], strides = [1, 1]} : vector<8x384xf32> to vector<8x128xf32>
    %107 = vector.extract_strided_slice %89 {offsets = [0, 256], sizes = [8, 128], strides = [1, 1]} : vector<8x384xf32> to vector<8x128xf32>
    %108 = vector.broadcast %9 : vector<1x128xf32> to vector<8x128xf32>
    %109 = arith.addf %107, %108 : vector<8x128xf32>
    %110 = arith.mulf %97, %109 : vector<8x128xf32>
    %111 = arith.addf %106, %110 : vector<8x128xf32>
    %112 = math.tanh %111 : vector<8x128xf32>
    %cst_33 = arith.constant 1.000000e+00 : f32
    %113 = vector.broadcast %cst_33 : f32 to vector<8x128xf32>
    %114 = arith.subf %113, %105 : vector<8x128xf32>
    %115 = arith.mulf %114, %112 : vector<8x128xf32>
    %116 = arith.mulf %105, %80 : vector<8x128xf32>
    %117 = arith.addf %115, %116 : vector<8x128xf32>
    %118 = arith.index_cast %c2_i32 : i32 to index
    %c0_34 = arith.constant 0 : index
    %c0_35 = arith.constant 0 : index
    %119 = vector.load %arg8[%118, %c0_34, %c0_35] : memref<8x8x128xf32, #tpu.memory_space<vmem>>, vector<1x8x128xf32>
    %120 = vector.shape_cast %119 : vector<1x8x128xf32> to vector<8x128xf32>
    %121 = vector.shape_cast %117 : vector<8x128xf32> to vector<1x8x128xf32>
    tpu.vector_store %arg8[%118, %c0_34, %c0_35], %121 {strides = array<i32>} : memref<8x8x128xf32, #tpu.memory_space<vmem>>, vector<1x8x128xf32>,
    %c3_i32 = arith.constant 3 : i32
    %c8_i32_36 = arith.constant 8 : i32
    %122 = arith.muli %c3_i32, %c8_i32_36 : i32
    %123 = tpu.assume_multiple %122, 8 : i32
    %124 = arith.index_cast %123 : i32 to index
    %c0_37 = arith.constant 0 : index
    %125 = vector.load %arg10[%124, %c0_37] : memref<64x384xf32, #tpu.memory_space<vmem>>, vector<8x384xf32>
    %cst_38 = arith.constant dense<0.000000e+00> : vector<8x384xf32>
    %126 = tpu.matmul %117, %8, %cst_38 {dimension_numbers = #tpu.dot_dimension_numbers<[1], [0], [0], [1], [0, 0, 1, 1], [], []>} : vector<8x128xf32>, vector<128x384xf32>, vector<8x384xf32> -> vector<8x384xf32>
    %127 = vector.extract_strided_slice %125 {offsets = [0, 0], sizes = [8, 128], strides = [1, 1]} : vector<8x384xf32> to vector<8x128xf32>
    %128 = vector.extract_strided_slice %126 {offsets = [0, 0], sizes = [8, 128], strides = [1, 1]} : vector<8x384xf32> to vector<8x128xf32>
    %129 = arith.addf %127, %128 : vector<8x128xf32>
    %130 = arith.negf %129 : vector<8x128xf32>
    %131 = math.exp %130 : vector<8x128xf32>
    %cst_39 = arith.constant 1.000000e+00 : f32
    %132 = vector.broadcast %cst_39 : f32 to vector<8x128xf32>
    %133 = arith.addf %132, %131 : vector<8x128xf32>
    %134 = arith.divf %132, %133 : vector<8x128xf32>
    %135 = vector.extract_strided_slice %125 {offsets = [0, 128], sizes = [8, 128], strides = [1, 1]} : vector<8x384xf32> to vector<8x128xf32>
    %136 = vector.extract_strided_slice %126 {offsets = [0, 128], sizes = [8, 128], strides = [1, 1]} : vector<8x384xf32> to vector<8x128xf32>
    %137 = arith.addf %135, %136 : vector<8x128xf32>
    %138 = arith.negf %137 : vector<8x128xf32>
    %139 = math.exp %138 : vector<8x128xf32>
    %cst_40 = arith.constant 1.000000e+00 : f32
    %140 = vector.broadcast %cst_40 : f32 to vector<8x128xf32>
    %141 = arith.addf %140, %139 : vector<8x128xf32>
    %142 = arith.divf %140, %141 : vector<8x128xf32>
    %143 = vector.extract_strided_slice %125 {offsets = [0, 256], sizes = [8, 128], strides = [1, 1]} : vector<8x384xf32> to vector<8x128xf32>
    %144 = vector.extract_strided_slice %126 {offsets = [0, 256], sizes = [8, 128], strides = [1, 1]} : vector<8x384xf32> to vector<8x128xf32>
    %145 = vector.broadcast %9 : vector<1x128xf32> to vector<8x128xf32>
    %146 = arith.addf %144, %145 : vector<8x128xf32>
    %147 = arith.mulf %134, %146 : vector<8x128xf32>
    %148 = arith.addf %143, %147 : vector<8x128xf32>
    %149 = math.tanh %148 : vector<8x128xf32>
    %cst_41 = arith.constant 1.000000e+00 : f32
    %150 = vector.broadcast %cst_41 : f32 to vector<8x128xf32>
    %151 = arith.subf %150, %142 : vector<8x128xf32>
    %152 = arith.mulf %151, %149 : vector<8x128xf32>
    %153 = arith.mulf %142, %117 : vector<8x128xf32>
    %154 = arith.addf %152, %153 : vector<8x128xf32>
    %155 = arith.index_cast %c3_i32 : i32 to index
    %c0_42 = arith.constant 0 : index
    %c0_43 = arith.constant 0 : index
    %156 = vector.load %arg8[%155, %c0_42, %c0_43] : memref<8x8x128xf32, #tpu.memory_space<vmem>>, vector<1x8x128xf32>
    %157 = vector.shape_cast %156 : vector<1x8x128xf32> to vector<8x128xf32>
    %158 = vector.shape_cast %154 : vector<8x128xf32> to vector<1x8x128xf32>
    tpu.vector_store %arg8[%155, %c0_42, %c0_43], %158 {strides = array<i32>} : memref<8x8x128xf32, #tpu.memory_space<vmem>>, vector<1x8x128xf32>,
    %c4_i32 = arith.constant 4 : i32
    %c8_i32_44 = arith.constant 8 : i32
    %159 = arith.muli %c4_i32, %c8_i32_44 : i32
    %160 = tpu.assume_multiple %159, 8 : i32
    %161 = arith.index_cast %160 : i32 to index
    %c0_45 = arith.constant 0 : index
    %162 = vector.load %arg10[%161, %c0_45] : memref<64x384xf32, #tpu.memory_space<vmem>>, vector<8x384xf32>
    %cst_46 = arith.constant dense<0.000000e+00> : vector<8x384xf32>
    %163 = tpu.matmul %154, %8, %cst_46 {dimension_numbers = #tpu.dot_dimension_numbers<[1], [0], [0], [1], [0, 0, 1, 1], [], []>} : vector<8x128xf32>, vector<128x384xf32>, vector<8x384xf32> -> vector<8x384xf32>
    %164 = vector.extract_strided_slice %162 {offsets = [0, 0], sizes = [8, 128], strides = [1, 1]} : vector<8x384xf32> to vector<8x128xf32>
    %165 = vector.extract_strided_slice %163 {offsets = [0, 0], sizes = [8, 128], strides = [1, 1]} : vector<8x384xf32> to vector<8x128xf32>
    %166 = arith.addf %164, %165 : vector<8x128xf32>
    %167 = arith.negf %166 : vector<8x128xf32>
    %168 = math.exp %167 : vector<8x128xf32>
    %cst_47 = arith.constant 1.000000e+00 : f32
    %169 = vector.broadcast %cst_47 : f32 to vector<8x128xf32>
    %170 = arith.addf %169, %168 : vector<8x128xf32>
    %171 = arith.divf %169, %170 : vector<8x128xf32>
    %172 = vector.extract_strided_slice %162 {offsets = [0, 128], sizes = [8, 128], strides = [1, 1]} : vector<8x384xf32> to vector<8x128xf32>
    %173 = vector.extract_strided_slice %163 {offsets = [0, 128], sizes = [8, 128], strides = [1, 1]} : vector<8x384xf32> to vector<8x128xf32>
    %174 = arith.addf %172, %173 : vector<8x128xf32>
    %175 = arith.negf %174 : vector<8x128xf32>
    %176 = math.exp %175 : vector<8x128xf32>
    %cst_48 = arith.constant 1.000000e+00 : f32
    %177 = vector.broadcast %cst_48 : f32 to vector<8x128xf32>
    %178 = arith.addf %177, %176 : vector<8x128xf32>
    %179 = arith.divf %177, %178 : vector<8x128xf32>
    %180 = vector.extract_strided_slice %162 {offsets = [0, 256], sizes = [8, 128], strides = [1, 1]} : vector<8x384xf32> to vector<8x128xf32>
    %181 = vector.extract_strided_slice %163 {offsets = [0, 256], sizes = [8, 128], strides = [1, 1]} : vector<8x384xf32> to vector<8x128xf32>
    %182 = vector.broadcast %9 : vector<1x128xf32> to vector<8x128xf32>
    %183 = arith.addf %181, %182 : vector<8x128xf32>
    %184 = arith.mulf %171, %183 : vector<8x128xf32>
    %185 = arith.addf %180, %184 : vector<8x128xf32>
    %186 = math.tanh %185 : vector<8x128xf32>
    %cst_49 = arith.constant 1.000000e+00 : f32
    %187 = vector.broadcast %cst_49 : f32 to vector<8x128xf32>
    %188 = arith.subf %187, %179 : vector<8x128xf32>
    %189 = arith.mulf %188, %186 : vector<8x128xf32>
    %190 = arith.mulf %179, %154 : vector<8x128xf32>
    %191 = arith.addf %189, %190 : vector<8x128xf32>
    %192 = arith.index_cast %c4_i32 : i32 to index
    %c0_50 = arith.constant 0 : index
    %c0_51 = arith.constant 0 : index
    %193 = vector.load %arg8[%192, %c0_50, %c0_51] : memref<8x8x128xf32, #tpu.memory_space<vmem>>, vector<1x8x128xf32>
    %194 = vector.shape_cast %193 : vector<1x8x128xf32> to vector<8x128xf32>
    %195 = vector.shape_cast %191 : vector<8x128xf32> to vector<1x8x128xf32>
    tpu.vector_store %arg8[%192, %c0_50, %c0_51], %195 {strides = array<i32>} : memref<8x8x128xf32, #tpu.memory_space<vmem>>, vector<1x8x128xf32>,
    %c5_i32 = arith.constant 5 : i32
    %c8_i32_52 = arith.constant 8 : i32
    %196 = arith.muli %c5_i32, %c8_i32_52 : i32
    %197 = tpu.assume_multiple %196, 8 : i32
    %198 = arith.index_cast %197 : i32 to index
    %c0_53 = arith.constant 0 : index
    %199 = vector.load %arg10[%198, %c0_53] : memref<64x384xf32, #tpu.memory_space<vmem>>, vector<8x384xf32>
    %cst_54 = arith.constant dense<0.000000e+00> : vector<8x384xf32>
    %200 = tpu.matmul %191, %8, %cst_54 {dimension_numbers = #tpu.dot_dimension_numbers<[1], [0], [0], [1], [0, 0, 1, 1], [], []>} : vector<8x128xf32>, vector<128x384xf32>, vector<8x384xf32> -> vector<8x384xf32>
    %201 = vector.extract_strided_slice %199 {offsets = [0, 0], sizes = [8, 128], strides = [1, 1]} : vector<8x384xf32> to vector<8x128xf32>
    %202 = vector.extract_strided_slice %200 {offsets = [0, 0], sizes = [8, 128], strides = [1, 1]} : vector<8x384xf32> to vector<8x128xf32>
    %203 = arith.addf %201, %202 : vector<8x128xf32>
    %204 = arith.negf %203 : vector<8x128xf32>
    %205 = math.exp %204 : vector<8x128xf32>
    %cst_55 = arith.constant 1.000000e+00 : f32
    %206 = vector.broadcast %cst_55 : f32 to vector<8x128xf32>
    %207 = arith.addf %206, %205 : vector<8x128xf32>
    %208 = arith.divf %206, %207 : vector<8x128xf32>
    %209 = vector.extract_strided_slice %199 {offsets = [0, 128], sizes = [8, 128], strides = [1, 1]} : vector<8x384xf32> to vector<8x128xf32>
    %210 = vector.extract_strided_slice %200 {offsets = [0, 128], sizes = [8, 128], strides = [1, 1]} : vector<8x384xf32> to vector<8x128xf32>
    %211 = arith.addf %209, %210 : vector<8x128xf32>
    %212 = arith.negf %211 : vector<8x128xf32>
    %213 = math.exp %212 : vector<8x128xf32>
    %cst_56 = arith.constant 1.000000e+00 : f32
    %214 = vector.broadcast %cst_56 : f32 to vector<8x128xf32>
    %215 = arith.addf %214, %213 : vector<8x128xf32>
    %216 = arith.divf %214, %215 : vector<8x128xf32>
    %217 = vector.extract_strided_slice %199 {offsets = [0, 256], sizes = [8, 128], strides = [1, 1]} : vector<8x384xf32> to vector<8x128xf32>
    %218 = vector.extract_strided_slice %200 {offsets = [0, 256], sizes = [8, 128], strides = [1, 1]} : vector<8x384xf32> to vector<8x128xf32>
    %219 = vector.broadcast %9 : vector<1x128xf32> to vector<8x128xf32>
    %220 = arith.addf %218, %219 : vector<8x128xf32>
    %221 = arith.mulf %208, %220 : vector<8x128xf32>
    %222 = arith.addf %217, %221 : vector<8x128xf32>
    %223 = math.tanh %222 : vector<8x128xf32>
    %cst_57 = arith.constant 1.000000e+00 : f32
    %224 = vector.broadcast %cst_57 : f32 to vector<8x128xf32>
    %225 = arith.subf %224, %216 : vector<8x128xf32>
    %226 = arith.mulf %225, %223 : vector<8x128xf32>
    %227 = arith.mulf %216, %191 : vector<8x128xf32>
    %228 = arith.addf %226, %227 : vector<8x128xf32>
    %229 = arith.index_cast %c5_i32 : i32 to index
    %c0_58 = arith.constant 0 : index
    %c0_59 = arith.constant 0 : index
    %230 = vector.load %arg8[%229, %c0_58, %c0_59] : memref<8x8x128xf32, #tpu.memory_space<vmem>>, vector<1x8x128xf32>
    %231 = vector.shape_cast %230 : vector<1x8x128xf32> to vector<8x128xf32>
    %232 = vector.shape_cast %228 : vector<8x128xf32> to vector<1x8x128xf32>
    tpu.vector_store %arg8[%229, %c0_58, %c0_59], %232 {strides = array<i32>} : memref<8x8x128xf32, #tpu.memory_space<vmem>>, vector<1x8x128xf32>,
    %c6_i32 = arith.constant 6 : i32
    %c8_i32_60 = arith.constant 8 : i32
    %233 = arith.muli %c6_i32, %c8_i32_60 : i32
    %234 = tpu.assume_multiple %233, 8 : i32
    %235 = arith.index_cast %234 : i32 to index
    %c0_61 = arith.constant 0 : index
    %236 = vector.load %arg10[%235, %c0_61] : memref<64x384xf32, #tpu.memory_space<vmem>>, vector<8x384xf32>
    %cst_62 = arith.constant dense<0.000000e+00> : vector<8x384xf32>
    %237 = tpu.matmul %228, %8, %cst_62 {dimension_numbers = #tpu.dot_dimension_numbers<[1], [0], [0], [1], [0, 0, 1, 1], [], []>} : vector<8x128xf32>, vector<128x384xf32>, vector<8x384xf32> -> vector<8x384xf32>
    %238 = vector.extract_strided_slice %236 {offsets = [0, 0], sizes = [8, 128], strides = [1, 1]} : vector<8x384xf32> to vector<8x128xf32>
    %239 = vector.extract_strided_slice %237 {offsets = [0, 0], sizes = [8, 128], strides = [1, 1]} : vector<8x384xf32> to vector<8x128xf32>
    %240 = arith.addf %238, %239 : vector<8x128xf32>
    %241 = arith.negf %240 : vector<8x128xf32>
    %242 = math.exp %241 : vector<8x128xf32>
    %cst_63 = arith.constant 1.000000e+00 : f32
    %243 = vector.broadcast %cst_63 : f32 to vector<8x128xf32>
    %244 = arith.addf %243, %242 : vector<8x128xf32>
    %245 = arith.divf %243, %244 : vector<8x128xf32>
    %246 = vector.extract_strided_slice %236 {offsets = [0, 128], sizes = [8, 128], strides = [1, 1]} : vector<8x384xf32> to vector<8x128xf32>
    %247 = vector.extract_strided_slice %237 {offsets = [0, 128], sizes = [8, 128], strides = [1, 1]} : vector<8x384xf32> to vector<8x128xf32>
    %248 = arith.addf %246, %247 : vector<8x128xf32>
    %249 = arith.negf %248 : vector<8x128xf32>
    %250 = math.exp %249 : vector<8x128xf32>
    %cst_64 = arith.constant 1.000000e+00 : f32
    %251 = vector.broadcast %cst_64 : f32 to vector<8x128xf32>
    %252 = arith.addf %251, %250 : vector<8x128xf32>
    %253 = arith.divf %251, %252 : vector<8x128xf32>
    %254 = vector.extract_strided_slice %236 {offsets = [0, 256], sizes = [8, 128], strides = [1, 1]} : vector<8x384xf32> to vector<8x128xf32>
    %255 = vector.extract_strided_slice %237 {offsets = [0, 256], sizes = [8, 128], strides = [1, 1]} : vector<8x384xf32> to vector<8x128xf32>
    %256 = vector.broadcast %9 : vector<1x128xf32> to vector<8x128xf32>
    %257 = arith.addf %255, %256 : vector<8x128xf32>
    %258 = arith.mulf %245, %257 : vector<8x128xf32>
    %259 = arith.addf %254, %258 : vector<8x128xf32>
    %260 = math.tanh %259 : vector<8x128xf32>
    %cst_65 = arith.constant 1.000000e+00 : f32
    %261 = vector.broadcast %cst_65 : f32 to vector<8x128xf32>
    %262 = arith.subf %261, %253 : vector<8x128xf32>
    %263 = arith.mulf %262, %260 : vector<8x128xf32>
    %264 = arith.mulf %253, %228 : vector<8x128xf32>
    %265 = arith.addf %263, %264 : vector<8x128xf32>
    %266 = arith.index_cast %c6_i32 : i32 to index
    %c0_66 = arith.constant 0 : index
    %c0_67 = arith.constant 0 : index
    %267 = vector.load %arg8[%266, %c0_66, %c0_67] : memref<8x8x128xf32, #tpu.memory_space<vmem>>, vector<1x8x128xf32>
    %268 = vector.shape_cast %267 : vector<1x8x128xf32> to vector<8x128xf32>
    %269 = vector.shape_cast %265 : vector<8x128xf32> to vector<1x8x128xf32>
    tpu.vector_store %arg8[%266, %c0_66, %c0_67], %269 {strides = array<i32>} : memref<8x8x128xf32, #tpu.memory_space<vmem>>, vector<1x8x128xf32>,
    %c7_i32 = arith.constant 7 : i32
    %c8_i32_68 = arith.constant 8 : i32
    %270 = arith.muli %c7_i32, %c8_i32_68 : i32
    %271 = tpu.assume_multiple %270, 8 : i32
    %272 = arith.index_cast %271 : i32 to index
    %c0_69 = arith.constant 0 : index
    %273 = vector.load %arg10[%272, %c0_69] : memref<64x384xf32, #tpu.memory_space<vmem>>, vector<8x384xf32>
    %cst_70 = arith.constant dense<0.000000e+00> : vector<8x384xf32>
    %274 = tpu.matmul %265, %8, %cst_70 {dimension_numbers = #tpu.dot_dimension_numbers<[1], [0], [0], [1], [0, 0, 1, 1], [], []>} : vector<8x128xf32>, vector<128x384xf32>, vector<8x384xf32> -> vector<8x384xf32>
    %275 = vector.extract_strided_slice %273 {offsets = [0, 0], sizes = [8, 128], strides = [1, 1]} : vector<8x384xf32> to vector<8x128xf32>
    %276 = vector.extract_strided_slice %274 {offsets = [0, 0], sizes = [8, 128], strides = [1, 1]} : vector<8x384xf32> to vector<8x128xf32>
    %277 = arith.addf %275, %276 : vector<8x128xf32>
    %278 = arith.negf %277 : vector<8x128xf32>
    %279 = math.exp %278 : vector<8x128xf32>
    %cst_71 = arith.constant 1.000000e+00 : f32
    %280 = vector.broadcast %cst_71 : f32 to vector<8x128xf32>
    %281 = arith.addf %280, %279 : vector<8x128xf32>
    %282 = arith.divf %280, %281 : vector<8x128xf32>
    %283 = vector.extract_strided_slice %273 {offsets = [0, 128], sizes = [8, 128], strides = [1, 1]} : vector<8x384xf32> to vector<8x128xf32>
    %284 = vector.extract_strided_slice %274 {offsets = [0, 128], sizes = [8, 128], strides = [1, 1]} : vector<8x384xf32> to vector<8x128xf32>
    %285 = arith.addf %283, %284 : vector<8x128xf32>
    %286 = arith.negf %285 : vector<8x128xf32>
    %287 = math.exp %286 : vector<8x128xf32>
    %cst_72 = arith.constant 1.000000e+00 : f32
    %288 = vector.broadcast %cst_72 : f32 to vector<8x128xf32>
    %289 = arith.addf %288, %287 : vector<8x128xf32>
    %290 = arith.divf %288, %289 : vector<8x128xf32>
    %291 = vector.extract_strided_slice %273 {offsets = [0, 256], sizes = [8, 128], strides = [1, 1]} : vector<8x384xf32> to vector<8x128xf32>
    %292 = vector.extract_strided_slice %274 {offsets = [0, 256], sizes = [8, 128], strides = [1, 1]} : vector<8x384xf32> to vector<8x128xf32>
    %293 = vector.broadcast %9 : vector<1x128xf32> to vector<8x128xf32>
    %294 = arith.addf %292, %293 : vector<8x128xf32>
    %295 = arith.mulf %282, %294 : vector<8x128xf32>
    %296 = arith.addf %291, %295 : vector<8x128xf32>
    %297 = math.tanh %296 : vector<8x128xf32>
    %cst_73 = arith.constant 1.000000e+00 : f32
    %298 = vector.broadcast %cst_73 : f32 to vector<8x128xf32>
    %299 = arith.subf %298, %290 : vector<8x128xf32>
    %300 = arith.mulf %299, %297 : vector<8x128xf32>
    %301 = arith.mulf %290, %265 : vector<8x128xf32>
    %302 = arith.addf %300, %301 : vector<8x128xf32>
    %303 = arith.index_cast %c7_i32 : i32 to index
    %c0_74 = arith.constant 0 : index
    %c0_75 = arith.constant 0 : index
    %304 = vector.load %arg8[%303, %c0_74, %c0_75] : memref<8x8x128xf32, #tpu.memory_space<vmem>>, vector<1x8x128xf32>
    %305 = vector.shape_cast %304 : vector<1x8x128xf32> to vector<8x128xf32>
    %306 = vector.shape_cast %302 : vector<8x128xf32> to vector<1x8x128xf32>
    tpu.vector_store %arg8[%303, %c0_74, %c0_75], %306 {strides = array<i32>} : memref<8x8x128xf32, #tpu.memory_space<vmem>>, vector<1x8x128xf32>,
    %c8_i32_76 = arith.constant 8 : i32
    %c0_77 = arith.constant 0 : index
    %c0_78 = arith.constant 0 : index
    %307 = vector.load %arg6[%c0_77, %c0_78] : memref<128x128xf32, #tpu.memory_space<vmem>>, vector<128x128xf32>
    %cst_79 = arith.constant dense<0.000000e+00> : vector<8x128xf32>
    %308 = tpu.matmul %302, %307, %cst_79 {dimension_numbers = #tpu.dot_dimension_numbers<[1], [0], [0], [1], [0, 0, 1, 1], [], []>} : vector<8x128xf32>, vector<128x128xf32>, vector<8x128xf32> -> vector<8x128xf32>
    %c0_80 = arith.constant 0 : index
    %c0_81 = arith.constant 0 : index
    %309 = vector.load %arg7[%c0_80, %c0_81] : memref<1x128xf32, #tpu.memory_space<vmem>>, vector<1x128xf32>
    %310 = vector.broadcast %309 : vector<1x128xf32> to vector<8x128xf32>
    %311 = arith.addf %308, %310 : vector<8x128xf32>
    %c0_82 = arith.constant 0 : index
    %c0_83 = arith.constant 0 : index
    %c0_84 = arith.constant 0 : index
    %312 = vector.load %arg9[%c0_82, %c0_83, %c0_84] : memref<1x8x128xf32, #tpu.memory_space<vmem>>, vector<1x8x128xf32>
    %313 = vector.shape_cast %312 : vector<1x8x128xf32> to vector<8x128xf32>
    %314 = vector.shape_cast %311 : vector<8x128xf32> to vector<1x8x128xf32>
    tpu.vector_store %arg9[%c0_82, %c0_83, %c0_84], %314 {strides = array<i32>} : memref<1x8x128xf32, #tpu.memory_space<vmem>>, vector<1x8x128xf32>,
    return
  }
  func.func @transform_0(%arg0: i32) -> (i32, i32, i32) {
    %c0_i32 = arith.constant 0 : i32
    %c0_i32_0 = arith.constant 0 : i32
    %c0_i32_1 = arith.constant 0 : i32
    return %c0_i32, %arg0, %c0_i32_0 : i32, i32, i32
  }
  func.func @transform_1(%arg0: i32) -> (i32, i32) {
    %c0_i32 = arith.constant 0 : i32
    %c0_i32_0 = arith.constant 0 : i32
    %c0_i32_1 = arith.constant 0 : i32
    return %c0_i32, %c0_i32_0 : i32, i32
  }
  func.func @transform_2(%arg0: i32) -> (i32, i32) {
    %c0_i32 = arith.constant 0 : i32
    %c0_i32_0 = arith.constant 0 : i32
    %c0_i32_1 = arith.constant 0 : i32
    return %c0_i32, %c0_i32_0 : i32, i32
  }
  func.func @transform_3(%arg0: i32) -> (i32, i32) {
    %c0_i32 = arith.constant 0 : i32
    %c0_i32_0 = arith.constant 0 : i32
    %c0_i32_1 = arith.constant 0 : i32
    return %c0_i32, %c0_i32_0 : i32, i32
  }
  func.func @transform_4(%arg0: i32) -> (i32, i32) {
    %c0_i32 = arith.constant 0 : i32
    %c0_i32_0 = arith.constant 0 : i32
    %c0_i32_1 = arith.constant 0 : i32
    return %c0_i32, %c0_i32_0 : i32, i32
  }
  func.func @transform_5(%arg0: i32) -> (i32, i32) {
    %c0_i32 = arith.constant 0 : i32
    %c0_i32_0 = arith.constant 0 : i32
    %c0_i32_1 = arith.constant 0 : i32
    return %c0_i32, %c0_i32_0 : i32, i32
  }
  func.func @transform_6(%arg0: i32) -> (i32, i32) {
    %c0_i32 = arith.constant 0 : i32
    %c0_i32_0 = arith.constant 0 : i32
    %c0_i32_1 = arith.constant 0 : i32
    return %c0_i32, %c0_i32_0 : i32, i32
  }
  func.func @transform_7(%arg0: i32) -> (i32, i32, i32) {
    %c0_i32 = arith.constant 0 : i32
    %c0_i32_0 = arith.constant 0 : i32
    %c0_i32_1 = arith.constant 0 : i32
    return %c0_i32, %arg0, %c0_i32_0 : i32, i32, i32
  }
  func.func @transform_8(%arg0: i32) -> (i32, i32, i32) {
    %c0_i32 = arith.constant 0 : i32
    %c0_i32_0 = arith.constant 0 : i32
    %c0_i32_1 = arith.constant 0 : i32
    return %c0_i32, %arg0, %c0_i32_0 : i32, i32, i32
  }
}

</mosaic_0001>

<llo_original>
// kernel: tpu_custom_call.1
$region0: #{tpu_custom_call.1}
  #allocation0 [shape = 'u32[]', space=smem, size = 0x4, offset = 0x4, fixed_abs, tag = 'smem constant byte address 0x4 - core index']
  #allocation1 [shape = 'u32[144,128]{1,0:T(1,128)}', space=vmem, size = 0x12000, scoped, tag = 'internal scratch']
  #allocation2 [shape = 'f32[64,384]{1,0:T(8,128)}', space=vmem, size = 0x18000, scoped, tag = 'scratch operand']
  %s0 = inlined_call_operand.hbm [shape: f32[8,8,128], index: 0, kind: input, shape index: {}]
  %s1 = inlined_call_operand.hbm [shape: f32[128,384], index: 1, kind: input, shape index: {}]
  %s2 = inlined_call_operand.hbm [shape: f32[128,384], index: 2, kind: input, shape index: {}]
  %s3 = inlined_call_operand.vmem [shape: f32[1,384], index: 3, kind: input, shape index: {}]
  %s4 = inlined_call_operand.vmem [shape: f32[1,128], index: 4, kind: input, shape index: {}]
  %s5 = inlined_call_operand.hbm [shape: f32[128,128], index: 5, kind: input, shape index: {}]
  %s6 = inlined_call_operand.vmem [shape: f32[1,128], index: 6, kind: input, shape index: {}]
  %s7 = inlined_call_operand.hbm [shape: f32[8,8,128], index: 7, kind: output, shape index: {0}]
  %s8 = inlined_call_operand.hbm [shape: f32[1,8,128], index: 8, kind: output, shape index: {1}]
  %9 = xla_tuple %s7, %s8
  %s10 = sld [smem:[#allocation0]]
  $region62: #{tpu_custom_call.1} parent=0
    _
  %s12 = ssub.s32 1, %s10
  %s13 = scalar_select 0, %s12, %s10
  $region1: #{tpu_custom_call.1} parent=0
    #allocation3 [shape = 'u8[32768]{0}', space=vmem, size = 0x8000, scoped, tag = 'input window, operand 0, single buffered']
    #allocation4 [shape = 's32[1]{0}', space=sflag, size = 0x4, scoped, tag = 'scoped memory for tpu_custom_call.1']
    #allocation5 [shape = 's32[1]{0}', space=sflag, size = 0x4, scoped, tag = 'scoped memory for tpu_custom_call.1']
    #allocation6 [shape = 'u8[196608]{0}', space=vmem, size = 0x30000, scoped, tag = 'input window, operand 1, single buffered']
    #allocation7 [shape = 's32[1]{0}', space=sflag, size = 0x4, scoped, tag = 'scoped memory for tpu_custom_call.1']
    #allocation8 [shape = 'u8[196608]{0}', space=vmem, size = 0x30000, scoped, tag = 'input window, operand 2, single buffered']
    #allocation9 [shape = 'u8[65536]{0}', space=vmem, size = 0x10000, scoped, tag = 'input window, operand 5, single buffered']
    #allocation10 [shape = 's32[1]{0}', space=sflag, size = 0x4, scoped, tag = 'scoped memory for tpu_custom_call.1']
    #allocation11 [shape = 'u8[32768]{0}', space=vmem, size = 0x8000, scoped, tag = 'output window, operand 0, single buffered']
    #allocation12 [shape = 'u8[4096]{0}', space=vmem, size = 0x1000, scoped, tag = 'output window, operand 1, single buffered']
    #allocation13 [shape = 's32[1]{0}', space=sflag, size = 0x4, scoped, tag = 'scoped memory for tpu_custom_call.1']
    %14 = vsyncpa [#allocation4], 0
    %15 = vsyncpa [#allocation7], 0
    %16 = vsyncpa [#allocation10], 0
    %17 = vsyncpa [#allocation5], 0
    %18 = vsyncpa [#allocation13], 0
    // Predicated region
    $region2: #{tpu_custom_call.1} parent=1 // pred_check
      _
    $region3: #{tpu_custom_call.1} parent=1 // pred_check_branch
      %20 = sbr.rel (0) target = $region5
    $region4: #{tpu_custom_call.1} parent=1 // pred_region
      %s22 = ssub.s32 1024, 1024
      %23 = vsyncadd [#allocation4], %s22
      %s24 = sshll.u32 [#allocation3], 4
      %s25 = int_to_ptr.vmem [resolvable:$true] %s24
      %30 = dma.hbm_to_vmem [thread:$0]  %s0, 1024, %s25, [#allocation4], 128, 128, 8
    $region5: #{tpu_custom_call.1} parent=1 // pred_fallthru
      _
    // Predicated region
    $region6: #{tpu_custom_call.1} parent=1 // pred_check
      _
    $region7: #{tpu_custom_call.1} parent=1 // pred_check_branch
      %32 = sbr.rel (0) target = $region9
    $region8: #{tpu_custom_call.1} parent=1 // pred_region
      %s34 = ssub.s32 6144, 6144
      %35 = vsyncadd [#allocation7], %s34
      %s36 = sshll.u32 [#allocation6], 4
      %s37 = int_to_ptr.vmem [resolvable:$true] %s36
      %42 = dma.hbm_to_vmem [thread:$0]  %s1, 6144, %s37, [#allocation7], 384, 384, 24
    $region9: #{tpu_custom_call.1} parent=1 // pred_fallthru
      _
    // Predicated region
    $region10: #{tpu_custom_call.1} parent=1 // pred_check
      _
    $region11: #{tpu_custom_call.1} parent=1 // pred_check_branch
      %44 = sbr.rel (0) target = $region13
    $region12: #{tpu_custom_call.1} parent=1 // pred_region
      %s46 = ssub.s32 6144, 6144
      %47 = vsyncadd [#allocation7], %s46
      %s48 = sshll.u32 [#allocation8], 4
      %s49 = int_to_ptr.vmem [resolvable:$true] %s48
      %54 = dma.hbm_to_vmem [thread:$0]  %s2, 6144, %s49, [#allocation7], 384, 384, 24
    $region13: #{tpu_custom_call.1} parent=1 // pred_fallthru
      _
    // Predicated region
    $region14: #{tpu_custom_call.1} parent=1 // pred_check
      _
    $region15: #{tpu_custom_call.1} parent=1 // pred_check_branch
      %56 = sbr.rel (0) target = $region17
    $region16: #{tpu_custom_call.1} parent=1 // pred_region
      _
    $region17: #{tpu_custom_call.1} parent=1 // pred_fallthru
      _
    // Predicated region
    $region18: #{tpu_custom_call.1} parent=1 // pred_check
      _
    $region19: #{tpu_custom_call.1} parent=1 // pred_check_branch
      %58 = sbr.rel (0) target = $region21
    $region20: #{tpu_custom_call.1} parent=1 // pred_region
      _
    $region21: #{tpu_custom_call.1} parent=1 // pred_fallthru
      _
    // Predicated region
    $region22: #{tpu_custom_call.1} parent=1 // pred_check
      _
    $region23: #{tpu_custom_call.1} parent=1 // pred_check_branch
      %60 = sbr.rel (0) target = $region25
    $region24: #{tpu_custom_call.1} parent=1 // pred_region
      %s62 = ssub.s32 2048, 2048
      %63 = vsyncadd [#allocation10], %s62
      %s64 = sshll.u32 [#allocation9], 4
      %s65 = int_to_ptr.vmem [resolvable:$true] %s64
      %70 = dma.hbm_to_vmem [thread:$0]  %s5, 2048, %s65, [#allocation10], 128, 128, 8
    $region25: #{tpu_custom_call.1} parent=1 // pred_fallthru
      _
    // Predicated region
    $region26: #{tpu_custom_call.1} parent=1 // pred_check
      _
    $region27: #{tpu_custom_call.1} parent=1 // pred_check_branch
      %72 = sbr.rel (0) target = $region29
    $region28: #{tpu_custom_call.1} parent=1 // pred_region
      _
    $region29: #{tpu_custom_call.1} parent=1 // pred_fallthru
      _
    // Predicated region
    $region30: #{tpu_custom_call.1} parent=1 // pred_check
      _
    $region31: #{tpu_custom_call.1} parent=1 // pred_check_branch
      %74 = sbr.rel (0) target = $region33
    $region32: #{tpu_custom_call.1} parent=1 // pred_region
      %75 = dma.done [#allocation4], 1024
    $region33: #{tpu_custom_call.1} parent=1 // pred_fallthru
      _
    // Predicated region
    $region34: #{tpu_custom_call.1} parent=1 // pred_check
      _
    $region35: #{tpu_custom_call.1} parent=1 // pred_check_branch
      %77 = sbr.rel (0) target = $region37
    $region36: #{tpu_custom_call.1} parent=1 // pred_region
      %78 = dma.done [#allocation7], 6144
    $region37: #{tpu_custom_call.1} parent=1 // pred_fallthru
      _
    // Predicated region
    $region38: #{tpu_custom_call.1} parent=1 // pred_check
      _
    $region39: #{tpu_custom_call.1} parent=1 // pred_check_branch
      %80 = sbr.rel (0) target = $region41
    $region40: #{tpu_custom_call.1} parent=1 // pred_region
      %81 = dma.done [#allocation7], 6144
    $region41: #{tpu_custom_call.1} parent=1 // pred_fallthru
      _
    // Predicated region
    $region42: #{tpu_custom_call.1} parent=1 // pred_check
      _
    $region43: #{tpu_custom_call.1} parent=1 // pred_check_branch
      %83 = sbr.rel (0) target = $region45
    $region44: #{tpu_custom_call.1} parent=1 // pred_region
      %84 = dma.done [#allocation10], 2048
    $region45: #{tpu_custom_call.1} parent=1 // pred_fallthru
      _
    %v85 = vld [vmem:[#allocation6] sm:$0xff]
    %v86 = vld [vmem:[#allocation6 + $0x8] sm:$0xff]
    %v87 = vld [vmem:[#allocation6 + $0x10] sm:$0xff]
    %v88 = vld [vmem:[#allocation6 + $0x18] sm:$0xff]
    %v89 = vld [vmem:[#allocation6 + $0x20] sm:$0xff]
    %v90 = vld [vmem:[#allocation6 + $0x28] sm:$0xff]
    %v91 = vld [vmem:[#allocation6 + $0x30] sm:$0xff]
    %v92 = vld [vmem:[#allocation6 + $0x38] sm:$0xff]
    %v93 = vld [vmem:[#allocation6 + $0x40] sm:$0xff]
    %v94 = vld [vmem:[#allocation6 + $0x48] sm:$0xff]
    %v95 = vld [vmem:[#allocation6 + $0x50] sm:$0xff]
    %v96 = vld [vmem:[#allocation6 + $0x58] sm:$0xff]
    %v97 = vld [vmem:[#allocation6 + $0x60] sm:$0xff]
    %v98 = vld [vmem:[#allocation6 + $0x68] sm:$0xff]
    %v99 = vld [vmem:[#allocation6 + $0x70] sm:$0xff]
    %v100 = vld [vmem:[#allocation6 + $0x78] sm:$0xff]
    %v101 = vld [vmem:[#allocation6 + $0x80] sm:$0xff]
    %v102 = vld [vmem:[#allocation6 + $0x88] sm:$0xff]
    %v103 = vld [vmem:[#allocation6 + $0x90] sm:$0xff]
    %v104 = vld [vmem:[#allocation6 + $0x98] sm:$0xff]
    %v105 = vld [vmem:[#allocation6 + $0xa0] sm:$0xff]
    %v106 = vld [vmem:[#allocation6 + $0xa8] sm:$0xff]
    %v107 = vld [vmem:[#allocation6 + $0xb0] sm:$0xff]
    %v108 = vld [vmem:[#allocation6 + $0xb8] sm:$0xff]
    %v109 = vld [vmem:[#allocation6 + $0xc0] sm:$0xff]
    %v110 = vld [vmem:[#allocation6 + $0xc8] sm:$0xff]
    %v111 = vld [vmem:[#allocation6 + $0xd0] sm:$0xff]
    %v112 = vld [vmem:[#allocation6 + $0xd8] sm:$0xff]
    %v113 = vld [vmem:[#allocation6 + $0xe0] sm:$0xff]
    %v114 = vld [vmem:[#allocation6 + $0xe8] sm:$0xff]
    %v115 = vld [vmem:[#allocation6 + $0xf0] sm:$0xff]
    %v116 = vld [vmem:[#allocation6 + $0xf8] sm:$0xff]
    %v117 = vld [vmem:[#allocation6 + $0x100] sm:$0xff]
    %v118 = vld [vmem:[#allocation6 + $0x108] sm:$0xff]
    %v119 = vld [vmem:[#allocation6 + $0x110] sm:$0xff]
    %v120 = vld [vmem:[#allocation6 + $0x118] sm:$0xff]
    %v121 = vld [vmem:[#allocation6 + $0x120] sm:$0xff]
    %v122 = vld [vmem:[#allocation6 + $0x128] sm:$0xff]
    %v123 = vld [vmem:[#allocation6 + $0x130] sm:$0xff]
    %v124 = vld [vmem:[#allocation6 + $0x138] sm:$0xff]
    %v125 = vld [vmem:[#allocation6 + $0x140] sm:$0xff]
    %v126 = vld [vmem:[#allocation6 + $0x148] sm:$0xff]
    %v127 = vld [vmem:[#allocation6 + $0x150] sm:$0xff]
    %v128 = vld [vmem:[#allocation6 + $0x158] sm:$0xff]
    %v129 = vld [vmem:[#allocation6 + $0x160] sm:$0xff]
    %v130 = vld [vmem:[#allocation6 + $0x168] sm:$0xff]
    %v131 = vld [vmem:[#allocation6 + $0x170] sm:$0xff]
    %v132 = vld [vmem:[#allocation6 + $0x178] sm:$0xff]
    %v133 = vld [vmem:[#allocation3] sm:$0xff]
    %v134 = vld [vmem:[#allocation3 + $0x8] sm:$0xff]
    %v135 = vld [vmem:[#allocation3 + $0x10] sm:$0xff]
    %v136 = vld [vmem:[#allocation3 + $0x18] sm:$0xff]
    %v137 = vld [vmem:[#allocation3 + $0x20] sm:$0xff]
    %v138 = vld [vmem:[#allocation3 + $0x28] sm:$0xff]
    %v139 = vld [vmem:[#allocation3 + $0x30] sm:$0xff]
    %v140 = vld [vmem:[#allocation3 + $0x38] sm:$0xff]
    %v141 = vld [vmem:[%s3] sm:$0x7]
    %v143 = vlaneseq
    %v144 = vshrl.u32 %v143, 7
    %v145 = vsub.s32 0, %v144
    %v146 = vrot.slane %v141, %v145
    %v147 = vlaneseq
    %v148 = vshrl.u32 %v147, 7
    %v149 = vsub.s32 1, %v148
    %v150 = vrot.slane %v141, %v149
    %v151 = vlaneseq
    %v152 = vshrl.u32 %v151, 7
    %v153 = vsub.s32 2, %v152
    %v154 = vrot.slane %v141, %v153
    %158 = vmatprep.subr.mxu0 %v86
    %159 = vmatpush1.msra.mxu0 %v85
    %160 = vmatprep.subr.mxu0 %v89
    %161 = vmatpush1.msra.mxu0 %v88
    %162 = vmatprep.subr.mxu0 %v92
    %163 = vmatpush1.msra.mxu0 %v91
    %164 = vmatprep.subr.mxu0 %v95
    %165 = vmatpush1.msra.mxu0 %v94
    %166 = vmatprep.subr.mxu0 %v98
    %167 = vmatpush1.msra.mxu0 %v97
    %168 = vmatprep.subr.mxu0 %v101
    %169 = vmatpush1.msra.mxu0 %v100
    %170 = vmatprep.subr.mxu0 %v104
    %171 = vmatpush1.msra.mxu0 %v103
    %172 = vmatprep.subr.mxu0 %v107
    %173 = vmatpush1.msra.mxu0 %v106
    %174 = vmatprep.subr.mxu0 %v110
    %175 = vmatpush1.msra.mxu0 %v109
    %176 = vmatprep.subr.mxu0 %v113
    %177 = vmatpush1.msra.mxu0 %v112
    %178 = vmatprep.subr.mxu0 %v116
    %179 = vmatpush1.msra.mxu0 %v115
    %180 = vmatprep.subr.mxu0 %v119
    %181 = vmatpush1.msra.mxu0 %v118
    %182 = vmatprep.subr.mxu0 %v122
    %183 = vmatpush1.msra.mxu0 %v121
    %184 = vmatprep.subr.mxu0 %v125
    %185 = vmatpush1.msra.mxu0 %v124
    %186 = vmatprep.subr.mxu0 %v128
    %187 = vmatpush1.msra.mxu0 %v127
    %188 = vmatprep.subr.mxu0 %v131
    %189 = vmatpush1.msra.mxu0 %v130
    %190 = vmatprep.subr.mxu0 0.0
    %191 = vmatpush1.msra.mxu0 0.0
    %192 = vmatprep.subr.mxu0 0.0
    %193 = vmatpush1.msra.mxu0 0.0
    %194 = vmatprep.subr.mxu0 0.0
    %195 = vmatpush1.msra.mxu0 0.0
    %196 = vmatprep.subr.mxu0 0.0
    %197 = vmatpush1.msra.mxu0 0.0
    %198 = vmatprep.subr.mxu0 0.0
    %199 = vmatpush1.msra.mxu0 0.0
    %200 = vmatprep.subr.mxu0 0.0
    %201 = vmatpush1.msra.mxu0 0.0
    %202 = vmatprep.subr.mxu0 0.0
    %203 = vmatpush1.msra.mxu0 0.0
    %204 = vmatprep.subr.mxu0 0.0
    %205 = vmatpush1.msra.mxu0 0.0
    %206 = vmatprep.subr.mxu0 0.0
    %207 = vmatpush1.msra.mxu0 0.0
    %208 = vmatprep.subr.mxu0 0.0
    %209 = vmatpush1.msra.mxu0 0.0
    %210 = vmatprep.subr.mxu0 0.0
    %211 = vmatpush1.msra.mxu0 0.0
    %212 = vmatprep.subr.mxu0 0.0
    %213 = vmatpush1.msra.mxu0 0.0
    %214 = vmatprep.subr.mxu0 0.0
    %215 = vmatpush1.msra.mxu0 0.0
    %216 = vmatprep.subr.mxu0 0.0
    %217 = vmatpush1.msra.mxu0 0.0
    %218 = vmatprep.subr.mxu0 0.0
    %219 = vmatpush1.msra.mxu0 0.0
    %220 = vmatprep.subr.mxu0 0.0
    %221 = vmatpush1.msra.mxu0 0.0
    %222 = vmatprep.mubr.f32.mxu0 0.0
    %223 = vmatmul.mubr.f32.gmra.mrb[0].mxu0 %v133
    %v224 = vpop.f32.mrb[0].mxu0
    %v225 = vadd.f32 %v146, %v224
    %v226 = vpop.f32.mrb[0].mxu0
    %v227 = vadd.f32 %v150, %v226
    %228 = vmatprep.mubr.f32.mxu0 0.0
    %229 = vmatmul.mubr.f32.gmra.mrb[0].mxu0 %v134
    %v230 = vpop.f32.mrb[0].mxu0
    %v231 = vadd.f32 %v146, %v230
    %v232 = vpop.f32.mrb[0].mxu0
    %v233 = vadd.f32 %v150, %v232
    %234 = vmatprep.mubr.f32.mxu0 0.0
    %235 = vmatmul.mubr.f32.gmra.mrb[0].mxu0 %v135
    %v236 = vpop.f32.mrb[0].mxu0
    %v237 = vadd.f32 %v146, %v236
    %v238 = vpop.f32.mrb[0].mxu0
    %v239 = vadd.f32 %v150, %v238
    %240 = vmatprep.mubr.f32.mxu0 0.0
    %241 = vmatmul.mubr.f32.gmra.mrb[0].mxu0 %v136
    %v242 = vpop.f32.mrb[0].mxu0
    %v243 = vadd.f32 %v146, %v242
    %v244 = vpop.f32.mrb[0].mxu0
    %v245 = vadd.f32 %v150, %v244
    %246 = vmatprep.mubr.f32.mxu0 0.0
    %247 = vmatmul.mubr.f32.gmra.mrb[0].mxu0 %v137
    %v248 = vpop.f32.mrb[0].mxu0
    %v249 = vadd.f32 %v146, %v248
    %v250 = vpop.f32.mrb[0].mxu0
    %v251 = vadd.f32 %v150, %v250
    %252 = vmatprep.mubr.f32.mxu0 0.0
    %253 = vmatmul.mubr.f32.gmra.mrb[0].mxu0 %v138
    %v254 = vpop.f32.mrb[0].mxu0
    %v255 = vadd.f32 %v146, %v254
    %v256 = vpop.f32.mrb[0].mxu0
    %v257 = vadd.f32 %v150, %v256
    %258 = vmatprep.mubr.f32.mxu0 0.0
    %259 = vmatmul.mubr.f32.gmra.mrb[0].mxu0 %v139
    %v260 = vpop.f32.mrb[0].mxu0
    %v261 = vadd.f32 %v146, %v260
    %v262 = vpop.f32.mrb[0].mxu0
    %v263 = vadd.f32 %v150, %v262
    %264 = vmatprep.mubr.f32.mxu0 0.0
    %265 = vmatmul.mubr.f32.gmra.mrb[0].mxu0 %v140
    %v266 = vpop.f32.mrb[0].mxu0
    %v267 = vadd.f32 %v146, %v266
    %v268 = vpop.f32.mrb[0].mxu0
    %v269 = vadd.f32 %v150, %v268
    %270 = vdwg.mxu0
    %271 = vmatprep.subr.mxu0 0.0
    %272 = vmatpush1.msra.mxu0 %v87
    %273 = vmatprep.subr.mxu0 0.0
    %274 = vmatpush1.msra.mxu0 %v90
    %275 = vmatprep.subr.mxu0 0.0
    %276 = vmatpush1.msra.mxu0 %v93
    %277 = vmatprep.subr.mxu0 0.0
    %278 = vmatpush1.msra.mxu0 %v96
    %279 = vmatprep.subr.mxu0 0.0
    %280 = vmatpush1.msra.mxu0 %v99
    %281 = vmatprep.subr.mxu0 0.0
    %282 = vmatpush1.msra.mxu0 %v102
    %283 = vmatprep.subr.mxu0 0.0
    %284 = vmatpush1.msra.mxu0 %v105
    %285 = vmatprep.subr.mxu0 0.0
    %286 = vmatpush1.msra.mxu0 %v108
    %287 = vmatprep.subr.mxu0 0.0
    %288 = vmatpush1.msra.mxu0 %v111
    %289 = vmatprep.subr.mxu0 0.0
    %290 = vmatpush1.msra.mxu0 %v114
    %291 = vmatprep.subr.mxu0 0.0
    %292 = vmatpush1.msra.mxu0 %v117
    %293 = vmatprep.subr.mxu0 0.0
    %294 = vmatpush1.msra.mxu0 %v120
    %295 = vmatprep.subr.mxu0 0.0
    %296 = vmatpush1.msra.mxu0 %v123
    %297 = vmatprep.subr.mxu0 0.0
    %298 = vmatpush1.msra.mxu0 %v126
    %299 = vmatprep.subr.mxu0 0.0
    %300 = vmatpush1.msra.mxu0 %v129
    %301 = vmatprep.subr.mxu0 0.0
    %302 = vmatpush1.msra.mxu0 %v132
    %303 = vmatprep.subr.mxu0 0.0
    %304 = vmatpush1.msra.mxu0 0.0
    %305 = vmatprep.subr.mxu0 0.0
    %306 = vmatpush1.msra.mxu0 0.0
    %307 = vmatprep.subr.mxu0 0.0
    %308 = vmatpush1.msra.mxu0 0.0
    %309 = vmatprep.subr.mxu0 0.0
    %310 = vmatpush1.msra.mxu0 0.0
    %311 = vmatprep.subr.mxu0 0.0
    %312 = vmatpush1.msra.mxu0 0.0
    %313 = vmatprep.subr.mxu0 0.0
    %314 = vmatpush1.msra.mxu0 0.0
    %315 = vmatprep.subr.mxu0 0.0
    %316 = vmatpush1.msra.mxu0 0.0
    %317 = vmatprep.subr.mxu0 0.0
    %318 = vmatpush1.msra.mxu0 0.0
    %319 = vmatprep.subr.mxu0 0.0
    %320 = vmatpush1.msra.mxu0 0.0
    %321 = vmatprep.subr.mxu0 0.0
    %322 = vmatpush1.msra.mxu0 0.0
    %323 = vmatprep.subr.mxu0 0.0
    %324 = vmatpush1.msra.mxu0 0.0
    %325 = vmatprep.subr.mxu0 0.0
    %326 = vmatpush1.msra.mxu0 0.0
    %327 = vmatprep.subr.mxu0 0.0
    %328 = vmatpush1.msra.mxu0 0.0
    %329 = vmatprep.subr.mxu0 0.0
    %330 = vmatpush1.msra.mxu0 0.0
    %331 = vmatprep.subr.mxu0 0.0
    %332 = vmatpush1.msra.mxu0 0.0
    %333 = vmatprep.subr.mxu0 0.0
    %334 = vmatpush1.msra.mxu0 0.0
    %335 = vmatprep.mubr.f32.mxu0 0.0
    %336 = vmatmul.mubr.f32.gmra.mrb[0].mxu0 %v133
    %v337 = vpop.f32.mrb[0].mxu0
    %v338 = vadd.f32 %v154, %v337
    %v339 = vpop.f32.mrb[0].mxu0
    %340 = vmatprep.mubr.f32.mxu0 0.0
    %341 = vmatmul.mubr.f32.gmra.mrb[0].mxu0 %v134
    %v342 = vpop.f32.mrb[0].mxu0
    %v343 = vadd.f32 %v154, %v342
    %v344 = vpop.f32.mrb[0].mxu0
    %345 = vmatprep.mubr.f32.mxu0 0.0
    %346 = vmatmul.mubr.f32.gmra.mrb[0].mxu0 %v135
    %v347 = vpop.f32.mrb[0].mxu0
    %v348 = vadd.f32 %v154, %v347
    %v349 = vpop.f32.mrb[0].mxu0
    %350 = vmatprep.mubr.f32.mxu0 0.0
    %351 = vmatmul.mubr.f32.gmra.mrb[0].mxu0 %v136
    %v352 = vpop.f32.mrb[0].mxu0
    %v353 = vadd.f32 %v154, %v352
    %v354 = vpop.f32.mrb[0].mxu0
    %355 = vmatprep.mubr.f32.mxu0 0.0
    %356 = vmatmul.mubr.f32.gmra.mrb[0].mxu0 %v137
    %v357 = vpop.f32.mrb[0].mxu0
    %v358 = vadd.f32 %v154, %v357
    %v359 = vpop.f32.mrb[0].mxu0
    %360 = vmatprep.mubr.f32.mxu0 0.0
    %361 = vmatmul.mubr.f32.gmra.mrb[0].mxu0 %v138
    %v362 = vpop.f32.mrb[0].mxu0
    %v363 = vadd.f32 %v154, %v362
    %v364 = vpop.f32.mrb[0].mxu0
    %365 = vmatprep.mubr.f32.mxu0 0.0
    %366 = vmatmul.mubr.f32.gmra.mrb[0].mxu0 %v139
    %v367 = vpop.f32.mrb[0].mxu0
    %v368 = vadd.f32 %v154, %v367
    %v369 = vpop.f32.mrb[0].mxu0
    %370 = vmatprep.mubr.f32.mxu0 0.0
    %371 = vmatmul.mubr.f32.gmra.mrb[0].mxu0 %v140
    %v372 = vpop.f32.mrb[0].mxu0
    %v373 = vadd.f32 %v154, %v372
    %v374 = vpop.f32.mrb[0].mxu0
    %375 = vdwg.mxu0
    %376 = vst [vmem:[#allocation2] sm:$0xff] %v225
    %377 = vst [vmem:[#allocation2 + $0x8] sm:$0xff] %v227
    %378 = vst [vmem:[#allocation2 + $0x10] sm:$0xff] %v338
    %379 = vst [vmem:[#allocation2 + $0x18] sm:$0xff] %v231
    %380 = vst [vmem:[#allocation2 + $0x20] sm:$0xff] %v233
    %381 = vst [vmem:[#allocation2 + $0x28] sm:$0xff] %v343
    %382 = vst [vmem:[#allocation2 + $0x30] sm:$0xff] %v237
    %383 = vst [vmem:[#allocation2 + $0x38] sm:$0xff] %v239
    %384 = vst [vmem:[#allocation2 + $0x40] sm:$0xff] %v348
    %385 = vst [vmem:[#allocation2 + $0x48] sm:$0xff] %v243
    %386 = vst [vmem:[#allocation2 + $0x50] sm:$0xff] %v245
    %387 = vst [vmem:[#allocation2 + $0x58] sm:$0xff] %v353
    %388 = vst [vmem:[#allocation2 + $0x60] sm:$0xff] %v249
    %389 = vst [vmem:[#allocation2 + $0x68] sm:$0xff] %v251
    %390 = vst [vmem:[#allocation2 + $0x70] sm:$0xff] %v358
    %391 = vst [vmem:[#allocation2 + $0x78] sm:$0xff] %v255
    %392 = vst [vmem:[#allocation2 + $0x80] sm:$0xff] %v257
    %393 = vst [vmem:[#allocation2 + $0x88] sm:$0xff] %v363
    %394 = vst [vmem:[#allocation2 + $0x90] sm:$0xff] %v261
    %395 = vst [vmem:[#allocation2 + $0x98] sm:$0xff] %v263
    %396 = vst [vmem:[#allocation2 + $0xa0] sm:$0xff] %v368
    %397 = vst [vmem:[#allocation2 + $0xa8] sm:$0xff] %v267
    %398 = vst [vmem:[#allocation2 + $0xb0] sm:$0xff] %v269
    %399 = vst [vmem:[#allocation2 + $0xb8] sm:$0xff] %v373
    %v400 = vld [vmem:[#allocation8] sm:$0xff]
    %v401 = vld [vmem:[#allocation8 + $0x8] sm:$0xff]
    %v402 = vld [vmem:[#allocation8 + $0x10] sm:$0xff]
    %v403 = vld [vmem:[#allocation8 + $0x18] sm:$0xff]
    %v404 = vld [vmem:[#allocation8 + $0x20] sm:$0xff]
    %v405 = vld [vmem:[#allocation8 + $0x28] sm:$0xff]
    %v406 = vld [vmem:[#allocation8 + $0x30] sm:$0xff]
    %v407 = vld [vmem:[#allocation8 + $0x38] sm:$0xff]
    %v408 = vld [vmem:[#allocation8 + $0x40] sm:$0xff]
    %v409 = vld [vmem:[#allocation8 + $0x48] sm:$0xff]
    %v410 = vld [vmem:[#allocation8 + $0x50] sm:$0xff]
    %v411 = vld [vmem:[#allocation8 + $0x58] sm:$0xff]
    %v412 = vld [vmem:[#allocation8 + $0x60] sm:$0xff]
    %v413 = vld [vmem:[#allocation8 + $0x68] sm:$0xff]
    %v414 = vld [vmem:[#allocation8 + $0x70] sm:$0xff]
    %v415 = vld [vmem:[#allocation8 + $0x78] sm:$0xff]
    %v416 = vld [vmem:[#allocation8 + $0x80] sm:$0xff]
    %v417 = vld [vmem:[#allocation8 + $0x88] sm:$0xff]
    %v418 = vld [vmem:[#allocation8 + $0x90] sm:$0xff]
    %v419 = vld [vmem:[#allocation8 + $0x98] sm:$0xff]
    %v420 = vld [vmem:[#allocation8 + $0xa0] sm:$0xff]
    %v421 = vld [vmem:[#allocation8 + $0xa8] sm:$0xff]
    %v422 = vld [vmem:[#allocation8 + $0xb0] sm:$0xff]
    %v423 = vld [vmem:[#allocation8 + $0xb8] sm:$0xff]
    %v424 = vld [vmem:[#allocation8 + $0xc0] sm:$0xff]
    %v425 = vld [vmem:[#allocation8 + $0xc8] sm:$0xff]
    %v426 = vld [vmem:[#allocation8 + $0xd0] sm:$0xff]
    %v427 = vld [vmem:[#allocation8 + $0xd8] sm:$0xff]
    %v428 = vld [vmem:[#allocation8 + $0xe0] sm:$0xff]
    %v429 = vld [vmem:[#allocation8 + $0xe8] sm:$0xff]
    %v430 = vld [vmem:[#allocation8 + $0xf0] sm:$0xff]
    %v431 = vld [vmem:[#allocation8 + $0xf8] sm:$0xff]
    %v432 = vld [vmem:[#allocation8 + $0x100] sm:$0xff]
    %v433 = vld [vmem:[#allocation8 + $0x108] sm:$0xff]
    %v434 = vld [vmem:[#allocation8 + $0x110] sm:$0xff]
    %v435 = vld [vmem:[#allocation8 + $0x118] sm:$0xff]
    %v436 = vld [vmem:[#allocation8 + $0x120] sm:$0xff]
    %v437 = vld [vmem:[#allocation8 + $0x128] sm:$0xff]
    %v438 = vld [vmem:[#allocation8 + $0x130] sm:$0xff]
    %v439 = vld [vmem:[#allocation8 + $0x138] sm:$0xff]
    %v440 = vld [vmem:[#allocation8 + $0x140] sm:$0xff]
    %v441 = vld [vmem:[#allocation8 + $0x148] sm:$0xff]
    %v442 = vld [vmem:[#allocation8 + $0x150] sm:$0xff]
    %v443 = vld [vmem:[#allocation8 + $0x158] sm:$0xff]
    %v444 = vld [vmem:[#allocation8 + $0x160] sm:$0xff]
    %v445 = vld [vmem:[#allocation8 + $0x168] sm:$0xff]
    %v446 = vld [vmem:[#allocation8 + $0x170] sm:$0xff]
    %v447 = vld [vmem:[#allocation8 + $0x178] sm:$0xff]
    %v448 = vld [vmem:[%s4] sm:$0x1]
    %s449 = smul.u32 0, 3
    %s450 = smul.addr %s449, 8
    %s451 = scalar_lea.vmem [#allocation2], %s450
    %v452 = vld [vmem:[%s451] sm:$0xff]
    %v453 = vld [vmem:[%s451 + $0x8] sm:$0xff]
    %v454 = vld [vmem:[%s451 + $0x10] sm:$0xff]
    %455 = vmatprep.subr.mxu0 %v401
    %456 = vmatpush1.msra.mxu0 %v400
    %457 = vmatprep.subr.mxu0 %v404
    %458 = vmatpush1.msra.mxu0 %v403
    %459 = vmatprep.subr.mxu0 %v407
    %460 = vmatpush1.msra.mxu0 %v406
    %461 = vmatprep.subr.mxu0 %v410
    %462 = vmatpush1.msra.mxu0 %v409
    %463 = vmatprep.subr.mxu0 %v413
    %464 = vmatpush1.msra.mxu0 %v412
    %465 = vmatprep.subr.mxu0 %v416
    %466 = vmatpush1.msra.mxu0 %v415
    %467 = vmatprep.subr.mxu0 %v419
    %468 = vmatpush1.msra.mxu0 %v418
    %469 = vmatprep.subr.mxu0 %v422
    %470 = vmatpush1.msra.mxu0 %v421
    %471 = vmatprep.subr.mxu0 %v425
    %472 = vmatpush1.msra.mxu0 %v424
    %473 = vmatprep.subr.mxu0 %v428
    %474 = vmatpush1.msra.mxu0 %v427
    %475 = vmatprep.subr.mxu0 %v431
    %476 = vmatpush1.msra.mxu0 %v430
    %477 = vmatprep.subr.mxu0 %v434
    %478 = vmatpush1.msra.mxu0 %v433
    %479 = vmatprep.subr.mxu0 %v437
    %480 = vmatpush1.msra.mxu0 %v436
    %481 = vmatprep.subr.mxu0 %v440
    %482 = vmatpush1.msra.mxu0 %v439
    %483 = vmatprep.subr.mxu0 %v443
    %484 = vmatpush1.msra.mxu0 %v442
    %485 = vmatprep.subr.mxu0 %v446
    %486 = vmatpush1.msra.mxu0 %v445
    %487 = vmatprep.subr.mxu0 0.0
    %488 = vmatpush1.msra.mxu0 0.0
    %489 = vmatprep.subr.mxu0 0.0
    %490 = vmatpush1.msra.mxu0 0.0
    %491 = vmatprep.subr.mxu0 0.0
    %492 = vmatpush1.msra.mxu0 0.0
    %493 = vmatprep.subr.mxu0 0.0
    %494 = vmatpush1.msra.mxu0 0.0
    %495 = vmatprep.subr.mxu0 0.0
    %496 = vmatpush1.msra.mxu0 0.0
    %497 = vmatprep.subr.mxu0 0.0
    %498 = vmatpush1.msra.mxu0 0.0
    %499 = vmatprep.subr.mxu0 0.0
    %500 = vmatpush1.msra.mxu0 0.0
    %501 = vmatprep.subr.mxu0 0.0
    %502 = vmatpush1.msra.mxu0 0.0
    %503 = vmatprep.subr.mxu0 0.0
    %504 = vmatpush1.msra.mxu0 0.0
    %505 = vmatprep.subr.mxu0 0.0
    %506 = vmatpush1.msra.mxu0 0.0
    %507 = vmatprep.subr.mxu0 0.0
    %508 = vmatpush1.msra.mxu0 0.0
    %509 = vmatprep.subr.mxu0 0.0
    %510 = vmatpush1.msra.mxu0 0.0
    %511 = vmatprep.subr.mxu0 0.0
    %512 = vmatpush1.msra.mxu0 0.0
    %513 = vmatprep.subr.mxu0 0.0
    %514 = vmatpush1.msra.mxu0 0.0
    %515 = vmatprep.subr.mxu0 0.0
    %516 = vmatpush1.msra.mxu0 0.0
    %517 = vmatprep.subr.mxu0 0.0
    %518 = vmatpush1.msra.mxu0 0.0
    %519 = vmatprep.mubr.f32.mxu0 0.0
    %520 = vmatmul.mubr.f32.gmra.mrb[0].mxu0 0.0
    %v521 = vpop.f32.mrb[0].mxu0
    %v522 = vadd.f32 0.0, %v521
    %v523 = vpop.f32.mrb[0].mxu0
    %v524 = vadd.f32 0.0, %v523
    %525 = vdwg.mxu0
    %526 = vmatprep.subr.mxu0 0.0
    %527 = vmatpush1.msra.mxu0 %v402
    %528 = vmatprep.subr.mxu0 0.0
    %529 = vmatpush1.msra.mxu0 %v405
    %530 = vmatprep.subr.mxu0 0.0
    %531 = vmatpush1.msra.mxu0 %v408
    %532 = vmatprep.subr.mxu0 0.0
    %533 = vmatpush1.msra.mxu0 %v411
    %534 = vmatprep.subr.mxu0 0.0
    %535 = vmatpush1.msra.mxu0 %v414
    %536 = vmatprep.subr.mxu0 0.0
    %537 = vmatpush1.msra.mxu0 %v417
    %538 = vmatprep.subr.mxu0 0.0
    %539 = vmatpush1.msra.mxu0 %v420
    %540 = vmatprep.subr.mxu0 0.0
    %541 = vmatpush1.msra.mxu0 %v423
    %542 = vmatprep.subr.mxu0 0.0
    %543 = vmatpush1.msra.mxu0 %v426
    %544 = vmatprep.subr.mxu0 0.0
    %545 = vmatpush1.msra.mxu0 %v429
    %546 = vmatprep.subr.mxu0 0.0
    %547 = vmatpush1.msra.mxu0 %v432
    %548 = vmatprep.subr.mxu0 0.0
    %549 = vmatpush1.msra.mxu0 %v435
    %550 = vmatprep.subr.mxu0 0.0
    %551 = vmatpush1.msra.mxu0 %v438
    %552 = vmatprep.subr.mxu0 0.0
    %553 = vmatpush1.msra.mxu0 %v441
    %554 = vmatprep.subr.mxu0 0.0
    %555 = vmatpush1.msra.mxu0 %v444
    %556 = vmatprep.subr.mxu0 0.0
    %557 = vmatpush1.msra.mxu0 %v447
    %558 = vmatprep.subr.mxu0 0.0
    %559 = vmatpush1.msra.mxu0 0.0
    %560 = vmatprep.subr.mxu0 0.0
    %561 = vmatpush1.msra.mxu0 0.0
    %562 = vmatprep.subr.mxu0 0.0
    %563 = vmatpush1.msra.mxu0 0.0
    %564 = vmatprep.subr.mxu0 0.0
    %565 = vmatpush1.msra.mxu0 0.0
    %566 = vmatprep.subr.mxu0 0.0
    %567 = vmatpush1.msra.mxu0 0.0
    %568 = vmatprep.subr.mxu0 0.0
    %569 = vmatpush1.msra.mxu0 0.0
    %570 = vmatprep.subr.mxu0 0.0
    %571 = vmatpush1.msra.mxu0 0.0
    %572 = vmatprep.subr.mxu0 0.0
    %573 = vmatpush1.msra.mxu0 0.0
    %574 = vmatprep.subr.mxu0 0.0
    %575 = vmatpush1.msra.mxu0 0.0
    %576 = vmatprep.subr.mxu0 0.0
    %577 = vmatpush1.msra.mxu0 0.0
    %578 = vmatprep.subr.mxu0 0.0
    %579 = vmatpush1.msra.mxu0 0.0
    %580 = vmatprep.subr.mxu0 0.0
    %581 = vmatpush1.msra.mxu0 0.0
    %582 = vmatprep.subr.mxu0 0.0
    %583 = vmatpush1.msra.mxu0 0.0
    %584 = vmatprep.subr.mxu0 0.0
    %585 = vmatpush1.msra.mxu0 0.0
    %586 = vmatprep.subr.mxu0 0.0
    %587 = vmatpush1.msra.mxu0 0.0
    %588 = vmatprep.subr.mxu0 0.0
    %589 = vmatpush1.msra.mxu0 0.0
    %590 = vmatprep.mubr.f32.mxu0 0.0
    %591 = vmatmul.mubr.f32.gmra.mrb[0].mxu0 0.0
    %v592 = vpop.f32.mrb[0].mxu0
    %v593 = vadd.f32 0.0, %v592
    %v594 = vpop.f32.mrb[0].mxu0
    %595 = vdwg.mxu0
    %v596 = vadd.f32 %v452, %v522
    %v597 = vxor.u32 %v596, 2147483648
    %v598 = vmul.f32 %v597, 1.442695
    %v599 = vpow.pop %v598
    %v600 = vadd.f32 %v599, 1.0
    %v601 = vrcp.pop %v600
    %v602 = vmul.f32 1.0, %v601
    %v603 = vadd.f32 %v453, %v524
    %v604 = vxor.u32 %v603, 2147483648
    %v605 = vmul.f32 %v604, 1.442695
    %v606 = vpow.pop %v605
    %v607 = vadd.f32 %v606, 1.0
    %v608 = vrcp.pop %v607
    %v609 = vmul.f32 1.0, %v608
    %v611 = vlaneseq
    %v612 = vshrl.u32 %v611, 7
    %v613 = vsub.s32 0, %v612
    %v614 = vrot.slane %v448, %v613
    %v616 = vadd.f32 %v593, %v614
    %v617 = vmul.f32 %v602, %v616
    %v618 = vadd.f32 %v454, %v617
    %v619 = vtanh.pop %v618
    %v620 = vsub.f32 1.0, %v609
    %v621 = vmul.f32 %v620, %v619
    %v622 = vmul.f32 %v609, 0.0
    %v623 = vadd.f32 %v621, %v622
    %624 = vst [vmem:[#allocation11] sm:$0xff] %v623
    %s625 = smul.u32 1, 3
    %s626 = smul.addr %s625, 8
    %s627 = scalar_lea.vmem [#allocation2], %s626
    %v628 = vld [vmem:[%s627] sm:$0xff]
    %v629 = vld [vmem:[%s627 + $0x8] sm:$0xff]
    %v630 = vld [vmem:[%s627 + $0x10] sm:$0xff]
    %631 = vmatprep.subr.mxu0 %v401
    %632 = vmatpush1.msra.mxu0 %v400
    %633 = vmatprep.subr.mxu0 %v404
    %634 = vmatpush1.msra.mxu0 %v403
    %635 = vmatprep.subr.mxu0 %v407
    %636 = vmatpush1.msra.mxu0 %v406
    %637 = vmatprep.subr.mxu0 %v410
    %638 = vmatpush1.msra.mxu0 %v409
    %639 = vmatprep.subr.mxu0 %v413
    %640 = vmatpush1.msra.mxu0 %v412
    %641 = vmatprep.subr.mxu0 %v416
    %642 = vmatpush1.msra.mxu0 %v415
    %643 = vmatprep.subr.mxu0 %v419
    %644 = vmatpush1.msra.mxu0 %v418
    %645 = vmatprep.subr.mxu0 %v422
    %646 = vmatpush1.msra.mxu0 %v421
    %647 = vmatprep.subr.mxu0 %v425
    %648 = vmatpush1.msra.mxu0 %v424
    %649 = vmatprep.subr.mxu0 %v428
    %650 = vmatpush1.msra.mxu0 %v427
    %651 = vmatprep.subr.mxu0 %v431
    %652 = vmatpush1.msra.mxu0 %v430
    %653 = vmatprep.subr.mxu0 %v434
    %654 = vmatpush1.msra.mxu0 %v433
    %655 = vmatprep.subr.mxu0 %v437
    %656 = vmatpush1.msra.mxu0 %v436
    %657 = vmatprep.subr.mxu0 %v440
    %658 = vmatpush1.msra.mxu0 %v439
    %659 = vmatprep.subr.mxu0 %v443
    %660 = vmatpush1.msra.mxu0 %v442
    %661 = vmatprep.subr.mxu0 %v446
    %662 = vmatpush1.msra.mxu0 %v445
    %663 = vmatprep.subr.mxu0 0.0
    %664 = vmatpush1.msra.mxu0 0.0
    %665 = vmatprep.subr.mxu0 0.0
    %666 = vmatpush1.msra.mxu0 0.0
    %667 = vmatprep.subr.mxu0 0.0
    %668 = vmatpush1.msra.mxu0 0.0
    %669 = vmatprep.subr.mxu0 0.0
    %670 = vmatpush1.msra.mxu0 0.0
    %671 = vmatprep.subr.mxu0 0.0
    %672 = vmatpush1.msra.mxu0 0.0
    %673 = vmatprep.subr.mxu0 0.0
    %674 = vmatpush1.msra.mxu0 0.0
    %675 = vmatprep.subr.mxu0 0.0
    %676 = vmatpush1.msra.mxu0 0.0
    %677 = vmatprep.subr.mxu0 0.0
    %678 = vmatpush1.msra.mxu0 0.0
    %679 = vmatprep.subr.mxu0 0.0
    %680 = vmatpush1.msra.mxu0 0.0
    %681 = vmatprep.subr.mxu0 0.0
    %682 = vmatpush1.msra.mxu0 0.0
    %683 = vmatprep.subr.mxu0 0.0
    %684 = vmatpush1.msra.mxu0 0.0
    %685 = vmatprep.subr.mxu0 0.0
    %686 = vmatpush1.msra.mxu0 0.0
    %687 = vmatprep.subr.mxu0 0.0
    %688 = vmatpush1.msra.mxu0 0.0
    %689 = vmatprep.subr.mxu0 0.0
    %690 = vmatpush1.msra.mxu0 0.0
    %691 = vmatprep.subr.mxu0 0.0
    %692 = vmatpush1.msra.mxu0 0.0
    %693 = vmatprep.subr.mxu0 0.0
    %694 = vmatpush1.msra.mxu0 0.0
    %695 = vmatprep.mubr.f32.mxu0 0.0
    %696 = vmatmul.mubr.f32.gmra.mrb[0].mxu0 %v623
    %v697 = vpop.f32.mrb[0].mxu0
    %v698 = vadd.f32 0.0, %v697
    %v699 = vpop.f32.mrb[0].mxu0
    %v700 = vadd.f32 0.0, %v699
    %701 = vdwg.mxu0
    %702 = vmatprep.subr.mxu0 0.0
    %703 = vmatpush1.msra.mxu0 %v402
    %704 = vmatprep.subr.mxu0 0.0
    %705 = vmatpush1.msra.mxu0 %v405
    %706 = vmatprep.subr.mxu0 0.0
    %707 = vmatpush1.msra.mxu0 %v408
    %708 = vmatprep.subr.mxu0 0.0
    %709 = vmatpush1.msra.mxu0 %v411
    %710 = vmatprep.subr.mxu0 0.0
    %711 = vmatpush1.msra.mxu0 %v414
    %712 = vmatprep.subr.mxu0 0.0
    %713 = vmatpush1.msra.mxu0 %v417
    %714 = vmatprep.subr.mxu0 0.0
    %715 = vmatpush1.msra.mxu0 %v420
    %716 = vmatprep.subr.mxu0 0.0
    %717 = vmatpush1.msra.mxu0 %v423
    %718 = vmatprep.subr.mxu0 0.0
    %719 = vmatpush1.msra.mxu0 %v426
    %720 = vmatprep.subr.mxu0 0.0
    %721 = vmatpush1.msra.mxu0 %v429
    %722 = vmatprep.subr.mxu0 0.0
    %723 = vmatpush1.msra.mxu0 %v432
    %724 = vmatprep.subr.mxu0 0.0
    %725 = vmatpush1.msra.mxu0 %v435
    %726 = vmatprep.subr.mxu0 0.0
    %727 = vmatpush1.msra.mxu0 %v438
    %728 = vmatprep.subr.mxu0 0.0
    %729 = vmatpush1.msra.mxu0 %v441
    %730 = vmatprep.subr.mxu0 0.0
    %731 = vmatpush1.msra.mxu0 %v444
    %732 = vmatprep.subr.mxu0 0.0
    %733 = vmatpush1.msra.mxu0 %v447
    %734 = vmatprep.subr.mxu0 0.0
    %735 = vmatpush1.msra.mxu0 0.0
    %736 = vmatprep.subr.mxu0 0.0
    %737 = vmatpush1.msra.mxu0 0.0
    %738 = vmatprep.subr.mxu0 0.0
    %739 = vmatpush1.msra.mxu0 0.0
    %740 = vmatprep.subr.mxu0 0.0
    %741 = vmatpush1.msra.mxu0 0.0
    %742 = vmatprep.subr.mxu0 0.0
    %743 = vmatpush1.msra.mxu0 0.0
    %744 = vmatprep.subr.mxu0 0.0
    %745 = vmatpush1.msra.mxu0 0.0
    %746 = vmatprep.subr.mxu0 0.0
    %747 = vmatpush1.msra.mxu0 0.0
    %748 = vmatprep.subr.mxu0 0.0
    %749 = vmatpush1.msra.mxu0 0.0
    %750 = vmatprep.subr.mxu0 0.0
    %751 = vmatpush1.msra.mxu0 0.0
    %752 = vmatprep.subr.mxu0 0.0
    %753 = vmatpush1.msra.mxu0 0.0
    %754 = vmatprep.subr.mxu0 0.0
    %755 = vmatpush1.msra.mxu0 0.0
    %756 = vmatprep.subr.mxu0 0.0
    %757 = vmatpush1.msra.mxu0 0.0
    %758 = vmatprep.subr.mxu0 0.0
    %759 = vmatpush1.msra.mxu0 0.0
    %760 = vmatprep.subr.mxu0 0.0
    %761 = vmatpush1.msra.mxu0 0.0
    %762 = vmatprep.subr.mxu0 0.0
    %763 = vmatpush1.msra.mxu0 0.0
    %764 = vmatprep.subr.mxu0 0.0
    %765 = vmatpush1.msra.mxu0 0.0
    %766 = vmatprep.mubr.f32.mxu0 0.0
    %767 = vmatmul.mubr.f32.gmra.mrb[0].mxu0 %v623
    %v768 = vpop.f32.mrb[0].mxu0
    %v769 = vadd.f32 0.0, %v768
    %v770 = vpop.f32.mrb[0].mxu0
    %771 = vdwg.mxu0
    %v772 = vadd.f32 %v628, %v698
    %v773 = vxor.u32 %v772, 2147483648
    %v774 = vmul.f32 %v773, 1.442695
    %v775 = vpow.pop %v774
    %v776 = vadd.f32 %v775, 1.0
    %v777 = vrcp.pop %v776
    %v778 = vmul.f32 1.0, %v777
    %v779 = vadd.f32 %v629, %v700
    %v780 = vxor.u32 %v779, 2147483648
    %v781 = vmul.f32 %v780, 1.442695
    %v782 = vpow.pop %v781
    %v783 = vadd.f32 %v782, 1.0
    %v784 = vrcp.pop %v783
    %v785 = vmul.f32 1.0, %v784
    %v786 = vadd.f32 %v769, %v614
    %v787 = vmul.f32 %v778, %v786
    %v788 = vadd.f32 %v630, %v787
    %v789 = vtanh.pop %v788
    %v790 = vsub.f32 1.0, %v785
    %v791 = vmul.f32 %v790, %v789
    %v792 = vmul.f32 %v785, %v623
    %v793 = vadd.f32 %v791, %v792
    %s794 = scalar_lea.vmem [#allocation11], 8
    %795 = vst [vmem:[%s794] sm:$0xff] %v793
    %s796 = smul.u32 2, 3
    %s797 = smul.addr %s796, 8
    %s798 = scalar_lea.vmem [#allocation2], %s797
    %v799 = vld [vmem:[%s798] sm:$0xff]
    %v800 = vld [vmem:[%s798 + $0x8] sm:$0xff]
    %v801 = vld [vmem:[%s798 + $0x10] sm:$0xff]
    %802 = vmatprep.subr.mxu0 %v401
    %803 = vmatpush1.msra.mxu0 %v400
    %804 = vmatprep.subr.mxu0 %v404
    %805 = vmatpush1.msra.mxu0 %v403
    %806 = vmatprep.subr.mxu0 %v407
    %807 = vmatpush1.msra.mxu0 %v406
    %808 = vmatprep.subr.mxu0 %v410
    %809 = vmatpush1.msra.mxu0 %v409
    %810 = vmatprep.subr.mxu0 %v413
    %811 = vmatpush1.msra.mxu0 %v412
    %812 = vmatprep.subr.mxu0 %v416
    %813 = vmatpush1.msra.mxu0 %v415
    %814 = vmatprep.subr.mxu0 %v419
    %815 = vmatpush1.msra.mxu0 %v418
    %816 = vmatprep.subr.mxu0 %v422
    %817 = vmatpush1.msra.mxu0 %v421
    %818 = vmatprep.subr.mxu0 %v425
    %819 = vmatpush1.msra.mxu0 %v424
    %820 = vmatprep.subr.mxu0 %v428
    %821 = vmatpush1.msra.mxu0 %v427
    %822 = vmatprep.subr.mxu0 %v431
    %823 = vmatpush1.msra.mxu0 %v430
    %824 = vmatprep.subr.mxu0 %v434
    %825 = vmatpush1.msra.mxu0 %v433
    %826 = vmatprep.subr.mxu0 %v437
    %827 = vmatpush1.msra.mxu0 %v436
    %828 = vmatprep.subr.mxu0 %v440
    %829 = vmatpush1.msra.mxu0 %v439
    %830 = vmatprep.subr.mxu0 %v443
    %831 = vmatpush1.msra.mxu0 %v442
    %832 = vmatprep.subr.mxu0 %v446
    %833 = vmatpush1.msra.mxu0 %v445
    %834 = vmatprep.subr.mxu0 0.0
    %835 = vmatpush1.msra.mxu0 0.0
    %836 = vmatprep.subr.mxu0 0.0
    %837 = vmatpush1.msra.mxu0 0.0
    %838 = vmatprep.subr.mxu0 0.0
    %839 = vmatpush1.msra.mxu0 0.0
    %840 = vmatprep.subr.mxu0 0.0
    %841 = vmatpush1.msra.mxu0 0.0
    %842 = vmatprep.subr.mxu0 0.0
    %843 = vmatpush1.msra.mxu0 0.0
    %844 = vmatprep.subr.mxu0 0.0
    %845 = vmatpush1.msra.mxu0 0.0
    %846 = vmatprep.subr.mxu0 0.0
    %847 = vmatpush1.msra.mxu0 0.0
    %848 = vmatprep.subr.mxu0 0.0
    %849 = vmatpush1.msra.mxu0 0.0
    %850 = vmatprep.subr.mxu0 0.0
    %851 = vmatpush1.msra.mxu0 0.0
    %852 = vmatprep.subr.mxu0 0.0
    %853 = vmatpush1.msra.mxu0 0.0
    %854 = vmatprep.subr.mxu0 0.0
    %855 = vmatpush1.msra.mxu0 0.0
    %856 = vmatprep.subr.mxu0 0.0
    %857 = vmatpush1.msra.mxu0 0.0
    %858 = vmatprep.subr.mxu0 0.0
    %859 = vmatpush1.msra.mxu0 0.0
    %860 = vmatprep.subr.mxu0 0.0
    %861 = vmatpush1.msra.mxu0 0.0
    %862 = vmatprep.subr.mxu0 0.0
    %863 = vmatpush1.msra.mxu0 0.0
    %864 = vmatprep.subr.mxu0 0.0
    %865 = vmatpush1.msra.mxu0 0.0
    %866 = vmatprep.mubr.f32.mxu0 0.0
    %867 = vmatmul.mubr.f32.gmra.mrb[0].mxu0 %v793
    %v868 = vpop.f32.mrb[0].mxu0
    %v869 = vadd.f32 0.0, %v868
    %v870 = vpop.f32.mrb[0].mxu0
    %v871 = vadd.f32 0.0, %v870
    %872 = vdwg.mxu0
    %873 = vmatprep.subr.mxu0 0.0
    %874 = vmatpush1.msra.mxu0 %v402
    %875 = vmatprep.subr.mxu0 0.0
    %876 = vmatpush1.msra.mxu0 %v405
    %877 = vmatprep.subr.mxu0 0.0
    %878 = vmatpush1.msra.mxu0 %v408
    %879 = vmatprep.subr.mxu0 0.0
    %880 = vmatpush1.msra.mxu0 %v411
    %881 = vmatprep.subr.mxu0 0.0
    %882 = vmatpush1.msra.mxu0 %v414
    %883 = vmatprep.subr.mxu0 0.0
    %884 = vmatpush1.msra.mxu0 %v417
    %885 = vmatprep.subr.mxu0 0.0
    %886 = vmatpush1.msra.mxu0 %v420
    %887 = vmatprep.subr.mxu0 0.0
    %888 = vmatpush1.msra.mxu0 %v423
    %889 = vmatprep.subr.mxu0 0.0
    %890 = vmatpush1.msra.mxu0 %v426
    %891 = vmatprep.subr.mxu0 0.0
    %892 = vmatpush1.msra.mxu0 %v429
    %893 = vmatprep.subr.mxu0 0.0
    %894 = vmatpush1.msra.mxu0 %v432
    %895 = vmatprep.subr.mxu0 0.0
    %896 = vmatpush1.msra.mxu0 %v435
    %897 = vmatprep.subr.mxu0 0.0
    %898 = vmatpush1.msra.mxu0 %v438
    %899 = vmatprep.subr.mxu0 0.0
    %900 = vmatpush1.msra.mxu0 %v441
    %901 = vmatprep.subr.mxu0 0.0
    %902 = vmatpush1.msra.mxu0 %v444
    %903 = vmatprep.subr.mxu0 0.0
    %904 = vmatpush1.msra.mxu0 %v447
    %905 = vmatprep.subr.mxu0 0.0
    %906 = vmatpush1.msra.mxu0 0.0
    %907 = vmatprep.subr.mxu0 0.0
    %908 = vmatpush1.msra.mxu0 0.0
    %909 = vmatprep.subr.mxu0 0.0
    %910 = vmatpush1.msra.mxu0 0.0
    %911 = vmatprep.subr.mxu0 0.0
    %912 = vmatpush1.msra.mxu0 0.0
    %913 = vmatprep.subr.mxu0 0.0
    %914 = vmatpush1.msra.mxu0 0.0
    %915 = vmatprep.subr.mxu0 0.0
    %916 = vmatpush1.msra.mxu0 0.0
    %917 = vmatprep.subr.mxu0 0.0
    %918 = vmatpush1.msra.mxu0 0.0
    %919 = vmatprep.subr.mxu0 0.0
    %920 = vmatpush1.msra.mxu0 0.0
    %921 = vmatprep.subr.mxu0 0.0
    %922 = vmatpush1.msra.mxu0 0.0
    %923 = vmatprep.subr.mxu0 0.0
    %924 = vmatpush1.msra.mxu0 0.0
    %925 = vmatprep.subr.mxu0 0.0
    %926 = vmatpush1.msra.mxu0 0.0
    %927 = vmatprep.subr.mxu0 0.0
    %928 = vmatpush1.msra.mxu0 0.0
    %929 = vmatprep.subr.mxu0 0.0
    %930 = vmatpush1.msra.mxu0 0.0
    %931 = vmatprep.subr.mxu0 0.0
    %932 = vmatpush1.msra.mxu0 0.0
    %933 = vmatprep.subr.mxu0 0.0
    %934 = vmatpush1.msra.mxu0 0.0
    %935 = vmatprep.subr.mxu0 0.0
    %936 = vmatpush1.msra.mxu0 0.0
    %937 = vmatprep.mubr.f32.mxu0 0.0
    %938 = vmatmul.mubr.f32.gmra.mrb[0].mxu0 %v793
    %v939 = vpop.f32.mrb[0].mxu0
    %v940 = vadd.f32 0.0, %v939
    %v941 = vpop.f32.mrb[0].mxu0
    %942 = vdwg.mxu0
    %v943 = vadd.f32 %v799, %v869
    %v944 = vxor.u32 %v943, 2147483648
    %v945 = vmul.f32 %v944, 1.442695
    %v946 = vpow.pop %v945
    %v947 = vadd.f32 %v946, 1.0
    %v948 = vrcp.pop %v947
    %v949 = vmul.f32 1.0, %v948
    %v950 = vadd.f32 %v800, %v871
    %v951 = vxor.u32 %v950, 2147483648
    %v952 = vmul.f32 %v951, 1.442695
    %v953 = vpow.pop %v952
    %v954 = vadd.f32 %v953, 1.0
    %v955 = vrcp.pop %v954
    %v956 = vmul.f32 1.0, %v955
    %v957 = vadd.f32 %v940, %v614
    %v958 = vmul.f32 %v949, %v957
    %v959 = vadd.f32 %v801, %v958
    %v960 = vtanh.pop %v959
    %v961 = vsub.f32 1.0, %v956
    %v962 = vmul.f32 %v961, %v960
    %v963 = vmul.f32 %v956, %v793
    %v964 = vadd.f32 %v962, %v963
    %s965 = scalar_lea.vmem [#allocation11], 16
    %966 = vst [vmem:[%s965] sm:$0xff] %v964
    %s967 = smul.u32 3, 3
    %s968 = smul.addr %s967, 8
    %s969 = scalar_lea.vmem [#allocation2], %s968
    %v970 = vld [vmem:[%s969] sm:$0xff]
    %v971 = vld [vmem:[%s969 + $0x8] sm:$0xff]
    %v972 = vld [vmem:[%s969 + $0x10] sm:$0xff]
    %973 = vmatprep.subr.mxu0 %v401
    %974 = vmatpush1.msra.mxu0 %v400
    %975 = vmatprep.subr.mxu0 %v404
    %976 = vmatpush1.msra.mxu0 %v403
    %977 = vmatprep.subr.mxu0 %v407
    %978 = vmatpush1.msra.mxu0 %v406
    %979 = vmatprep.subr.mxu0 %v410
    %980 = vmatpush1.msra.mxu0 %v409
    %981 = vmatprep.subr.mxu0 %v413
    %982 = vmatpush1.msra.mxu0 %v412
    %983 = vmatprep.subr.mxu0 %v416
    %984 = vmatpush1.msra.mxu0 %v415
    %985 = vmatprep.subr.mxu0 %v419
    %986 = vmatpush1.msra.mxu0 %v418
    %987 = vmatprep.subr.mxu0 %v422
    %988 = vmatpush1.msra.mxu0 %v421
    %989 = vmatprep.subr.mxu0 %v425
    %990 = vmatpush1.msra.mxu0 %v424
    %991 = vmatprep.subr.mxu0 %v428
    %992 = vmatpush1.msra.mxu0 %v427
    %993 = vmatprep.subr.mxu0 %v431
    %994 = vmatpush1.msra.mxu0 %v430
    %995 = vmatprep.subr.mxu0 %v434
    %996 = vmatpush1.msra.mxu0 %v433
    %997 = vmatprep.subr.mxu0 %v437
    %998 = vmatpush1.msra.mxu0 %v436
    %999 = vmatprep.subr.mxu0 %v440
    %1000 = vmatpush1.msra.mxu0 %v439
    %1001 = vmatprep.subr.mxu0 %v443
    %1002 = vmatpush1.msra.mxu0 %v442
    %1003 = vmatprep.subr.mxu0 %v446
    %1004 = vmatpush1.msra.mxu0 %v445
    %1005 = vmatprep.subr.mxu0 0.0
    %1006 = vmatpush1.msra.mxu0 0.0
    %1007 = vmatprep.subr.mxu0 0.0
    %1008 = vmatpush1.msra.mxu0 0.0
    %1009 = vmatprep.subr.mxu0 0.0
    %1010 = vmatpush1.msra.mxu0 0.0
    %1011 = vmatprep.subr.mxu0 0.0
    %1012 = vmatpush1.msra.mxu0 0.0
    %1013 = vmatprep.subr.mxu0 0.0
    %1014 = vmatpush1.msra.mxu0 0.0
    %1015 = vmatprep.subr.mxu0 0.0
    %1016 = vmatpush1.msra.mxu0 0.0
    %1017 = vmatprep.subr.mxu0 0.0
    %1018 = vmatpush1.msra.mxu0 0.0
    %1019 = vmatprep.subr.mxu0 0.0
    %1020 = vmatpush1.msra.mxu0 0.0
    %1021 = vmatprep.subr.mxu0 0.0
    %1022 = vmatpush1.msra.mxu0 0.0
    %1023 = vmatprep.subr.mxu0 0.0
    %1024 = vmatpush1.msra.mxu0 0.0
    %1025 = vmatprep.subr.mxu0 0.0
    %1026 = vmatpush1.msra.mxu0 0.0
    %1027 = vmatprep.subr.mxu0 0.0
    %1028 = vmatpush1.msra.mxu0 0.0
    %1029 = vmatprep.subr.mxu0 0.0
    %1030 = vmatpush1.msra.mxu0 0.0
    %1031 = vmatprep.subr.mxu0 0.0
    %1032 = vmatpush1.msra.mxu0 0.0
    %1033 = vmatprep.subr.mxu0 0.0
    %1034 = vmatpush1.msra.mxu0 0.0
    %1035 = vmatprep.subr.mxu0 0.0
    %1036 = vmatpush1.msra.mxu0 0.0
    %1037 = vmatprep.mubr.f32.mxu0 0.0
    %1038 = vmatmul.mubr.f32.gmra.mrb[0].mxu0 %v964
    %v1039 = vpop.f32.mrb[0].mxu0
    %v1040 = vadd.f32 0.0, %v1039
    %v1041 = vpop.f32.mrb[0].mxu0
    %v1042 = vadd.f32 0.0, %v1041
    %1043 = vdwg.mxu0
    %1044 = vmatprep.subr.mxu0 0.0
    %1045 = vmatpush1.msra.mxu0 %v402
    %1046 = vmatprep.subr.mxu0 0.0
    %1047 = vmatpush1.msra.mxu0 %v405
    %1048 = vmatprep.subr.mxu0 0.0
    %1049 = vmatpush1.msra.mxu0 %v408
    %1050 = vmatprep.subr.mxu0 0.0
    %1051 = vmatpush1.msra.mxu0 %v411
    %1052 = vmatprep.subr.mxu0 0.0
    %1053 = vmatpush1.msra.mxu0 %v414
    %1054 = vmatprep.subr.mxu0 0.0
    %1055 = vmatpush1.msra.mxu0 %v417
    %1056 = vmatprep.subr.mxu0 0.0
    %1057 = vmatpush1.msra.mxu0 %v420
    %1058 = vmatprep.subr.mxu0 0.0
    %1059 = vmatpush1.msra.mxu0 %v423
    %1060 = vmatprep.subr.mxu0 0.0
    %1061 = vmatpush1.msra.mxu0 %v426
    %1062 = vmatprep.subr.mxu0 0.0
    %1063 = vmatpush1.msra.mxu0 %v429
    %1064 = vmatprep.subr.mxu0 0.0
    %1065 = vmatpush1.msra.mxu0 %v432
    %1066 = vmatprep.subr.mxu0 0.0
    %1067 = vmatpush1.msra.mxu0 %v435
    %1068 = vmatprep.subr.mxu0 0.0
    %1069 = vmatpush1.msra.mxu0 %v438
    %1070 = vmatprep.subr.mxu0 0.0
    %1071 = vmatpush1.msra.mxu0 %v441
    %1072 = vmatprep.subr.mxu0 0.0
    %1073 = vmatpush1.msra.mxu0 %v444
    %1074 = vmatprep.subr.mxu0 0.0
    %1075 = vmatpush1.msra.mxu0 %v447
    %1076 = vmatprep.subr.mxu0 0.0
    %1077 = vmatpush1.msra.mxu0 0.0
    %1078 = vmatprep.subr.mxu0 0.0
    %1079 = vmatpush1.msra.mxu0 0.0
    %1080 = vmatprep.subr.mxu0 0.0
    %1081 = vmatpush1.msra.mxu0 0.0
    %1082 = vmatprep.subr.mxu0 0.0
    %1083 = vmatpush1.msra.mxu0 0.0
    %1084 = vmatprep.subr.mxu0 0.0
    %1085 = vmatpush1.msra.mxu0 0.0
    %1086 = vmatprep.subr.mxu0 0.0
    %1087 = vmatpush1.msra.mxu0 0.0
    %1088 = vmatprep.subr.mxu0 0.0
    %1089 = vmatpush1.msra.mxu0 0.0
    %1090 = vmatprep.subr.mxu0 0.0
    %1091 = vmatpush1.msra.mxu0 0.0
    %1092 = vmatprep.subr.mxu0 0.0
    %1093 = vmatpush1.msra.mxu0 0.0
    %1094 = vmatprep.subr.mxu0 0.0
    %1095 = vmatpush1.msra.mxu0 0.0
    %1096 = vmatprep.subr.mxu0 0.0
    %1097 = vmatpush1.msra.mxu0 0.0
    %1098 = vmatprep.subr.mxu0 0.0
    %1099 = vmatpush1.msra.mxu0 0.0
    %1100 = vmatprep.subr.mxu0 0.0
    %1101 = vmatpush1.msra.mxu0 0.0
    %1102 = vmatprep.subr.mxu0 0.0
    %1103 = vmatpush1.msra.mxu0 0.0
    %1104 = vmatprep.subr.mxu0 0.0
    %1105 = vmatpush1.msra.mxu0 0.0
    %1106 = vmatprep.subr.mxu0 0.0
    %1107 = vmatpush1.msra.mxu0 0.0
    %1108 = vmatprep.mubr.f32.mxu0 0.0
    %1109 = vmatmul.mubr.f32.gmra.mrb[0].mxu0 %v964
    %v1110 = vpop.f32.mrb[0].mxu0
    %v1111 = vadd.f32 0.0, %v1110
    %v1112 = vpop.f32.mrb[0].mxu0
    %1113 = vdwg.mxu0
    %v1114 = vadd.f32 %v970, %v1040
    %v1115 = vxor.u32 %v1114, 2147483648
    %v1116 = vmul.f32 %v1115, 1.442695
    %v1117 = vpow.pop %v1116
    %v1118 = vadd.f32 %v1117, 1.0
    %v1119 = vrcp.pop %v1118
    %v1120 = vmul.f32 1.0, %v1119
    %v1121 = vadd.f32 %v971, %v1042
    %v1122 = vxor.u32 %v1121, 2147483648
    %v1123 = vmul.f32 %v1122, 1.442695
    %v1124 = vpow.pop %v1123
    %v1125 = vadd.f32 %v1124, 1.0
    %v1126 = vrcp.pop %v1125
    %v1127 = vmul.f32 1.0, %v1126
    %v1128 = vadd.f32 %v1111, %v614
    %v1129 = vmul.f32 %v1120, %v1128
    %v1130 = vadd.f32 %v972, %v1129
    %v1131 = vtanh.pop %v1130
    %v1132 = vsub.f32 1.0, %v1127
    %v1133 = vmul.f32 %v1132, %v1131
    %v1134 = vmul.f32 %v1127, %v964
    %v1135 = vadd.f32 %v1133, %v1134
    %s1136 = scalar_lea.vmem [#allocation11], 24
    %1137 = vst [vmem:[%s1136] sm:$0xff] %v1135
    %s1138 = smul.u32 4, 3
    %s1139 = smul.addr %s1138, 8
    %s1140 = scalar_lea.vmem [#allocation2], %s1139
    %v1141 = vld [vmem:[%s1140] sm:$0xff]
    %v1142 = vld [vmem:[%s1140 + $0x8] sm:$0xff]
    %v1143 = vld [vmem:[%s1140 + $0x10] sm:$0xff]
    %1144 = vmatprep.subr.mxu0 %v401
    %1145 = vmatpush1.msra.mxu0 %v400
    %1146 = vmatprep.subr.mxu0 %v404
    %1147 = vmatpush1.msra.mxu0 %v403
    %1148 = vmatprep.subr.mxu0 %v407
    %1149 = vmatpush1.msra.mxu0 %v406
    %1150 = vmatprep.subr.mxu0 %v410
    %1151 = vmatpush1.msra.mxu0 %v409
    %1152 = vmatprep.subr.mxu0 %v413
    %1153 = vmatpush1.msra.mxu0 %v412
    %1154 = vmatprep.subr.mxu0 %v416
    %1155 = vmatpush1.msra.mxu0 %v415
    %1156 = vmatprep.subr.mxu0 %v419
    %1157 = vmatpush1.msra.mxu0 %v418
    %1158 = vmatprep.subr.mxu0 %v422
    %1159 = vmatpush1.msra.mxu0 %v421
    %1160 = vmatprep.subr.mxu0 %v425
    %1161 = vmatpush1.msra.mxu0 %v424
    %1162 = vmatprep.subr.mxu0 %v428
    %1163 = vmatpush1.msra.mxu0 %v427
    %1164 = vmatprep.subr.mxu0 %v431
    %1165 = vmatpush1.msra.mxu0 %v430
    %1166 = vmatprep.subr.mxu0 %v434
    %1167 = vmatpush1.msra.mxu0 %v433
    %1168 = vmatprep.subr.mxu0 %v437
    %1169 = vmatpush1.msra.mxu0 %v436
    %1170 = vmatprep.subr.mxu0 %v440
    %1171 = vmatpush1.msra.mxu0 %v439
    %1172 = vmatprep.subr.mxu0 %v443
    %1173 = vmatpush1.msra.mxu0 %v442
    %1174 = vmatprep.subr.mxu0 %v446
    %1175 = vmatpush1.msra.mxu0 %v445
    %1176 = vmatprep.subr.mxu0 0.0
    %1177 = vmatpush1.msra.mxu0 0.0
    %1178 = vmatprep.subr.mxu0 0.0
    %1179 = vmatpush1.msra.mxu0 0.0
    %1180 = vmatprep.subr.mxu0 0.0
    %1181 = vmatpush1.msra.mxu0 0.0
    %1182 = vmatprep.subr.mxu0 0.0
    %1183 = vmatpush1.msra.mxu0 0.0
    %1184 = vmatprep.subr.mxu0 0.0
    %1185 = vmatpush1.msra.mxu0 0.0
    %1186 = vmatprep.subr.mxu0 0.0
    %1187 = vmatpush1.msra.mxu0 0.0
    %1188 = vmatprep.subr.mxu0 0.0
    %1189 = vmatpush1.msra.mxu0 0.0
    %1190 = vmatprep.subr.mxu0 0.0
    %1191 = vmatpush1.msra.mxu0 0.0
    %1192 = vmatprep.subr.mxu0 0.0
    %1193 = vmatpush1.msra.mxu0 0.0
    %1194 = vmatprep.subr.mxu0 0.0
    %1195 = vmatpush1.msra.mxu0 0.0
    %1196 = vmatprep.subr.mxu0 0.0
    %1197 = vmatpush1.msra.mxu0 0.0
    %1198 = vmatprep.subr.mxu0 0.0
    %1199 = vmatpush1.msra.mxu0 0.0
    %1200 = vmatprep.subr.mxu0 0.0
    %1201 = vmatpush1.msra.mxu0 0.0
    %1202 = vmatprep.subr.mxu0 0.0
    %1203 = vmatpush1.msra.mxu0 0.0
    %1204 = vmatprep.subr.mxu0 0.0
    %1205 = vmatpush1.msra.mxu0 0.0
    %1206 = vmatprep.subr.mxu0 0.0
    %1207 = vmatpush1.msra.mxu0 0.0
    %1208 = vmatprep.mubr.f32.mxu0 0.0
    %1209 = vmatmul.mubr.f32.gmra.mrb[0].mxu0 %v1135
    %v1210 = vpop.f32.mrb[0].mxu0
    %v1211 = vadd.f32 0.0, %v1210
    %v1212 = vpop.f32.mrb[0].mxu0
    %v1213 = vadd.f32 0.0, %v1212
    %1214 = vdwg.mxu0
    %1215 = vmatprep.subr.mxu0 0.0
    %1216 = vmatpush1.msra.mxu0 %v402
    %1217 = vmatprep.subr.mxu0 0.0
    %1218 = vmatpush1.msra.mxu0 %v405
    %1219 = vmatprep.subr.mxu0 0.0
    %1220 = vmatpush1.msra.mxu0 %v408
    %1221 = vmatprep.subr.mxu0 0.0
    %1222 = vmatpush1.msra.mxu0 %v411
    %1223 = vmatprep.subr.mxu0 0.0
    %1224 = vmatpush1.msra.mxu0 %v414
    %1225 = vmatprep.subr.mxu0 0.0
    %1226 = vmatpush1.msra.mxu0 %v417
    %1227 = vmatprep.subr.mxu0 0.0
    %1228 = vmatpush1.msra.mxu0 %v420
    %1229 = vmatprep.subr.mxu0 0.0
    %1230 = vmatpush1.msra.mxu0 %v423
    %1231 = vmatprep.subr.mxu0 0.0
    %1232 = vmatpush1.msra.mxu0 %v426
    %1233 = vmatprep.subr.mxu0 0.0
    %1234 = vmatpush1.msra.mxu0 %v429
    %1235 = vmatprep.subr.mxu0 0.0
    %1236 = vmatpush1.msra.mxu0 %v432
    %1237 = vmatprep.subr.mxu0 0.0
    %1238 = vmatpush1.msra.mxu0 %v435
    %1239 = vmatprep.subr.mxu0 0.0
    %1240 = vmatpush1.msra.mxu0 %v438
    %1241 = vmatprep.subr.mxu0 0.0
    %1242 = vmatpush1.msra.mxu0 %v441
    %1243 = vmatprep.subr.mxu0 0.0
    %1244 = vmatpush1.msra.mxu0 %v444
    %1245 = vmatprep.subr.mxu0 0.0
    %1246 = vmatpush1.msra.mxu0 %v447
    %1247 = vmatprep.subr.mxu0 0.0
    %1248 = vmatpush1.msra.mxu0 0.0
    %1249 = vmatprep.subr.mxu0 0.0
    %1250 = vmatpush1.msra.mxu0 0.0
    %1251 = vmatprep.subr.mxu0 0.0
    %1252 = vmatpush1.msra.mxu0 0.0
    %1253 = vmatprep.subr.mxu0 0.0
    %1254 = vmatpush1.msra.mxu0 0.0
    %1255 = vmatprep.subr.mxu0 0.0
    %1256 = vmatpush1.msra.mxu0 0.0
    %1257 = vmatprep.subr.mxu0 0.0
    %1258 = vmatpush1.msra.mxu0 0.0
    %1259 = vmatprep.subr.mxu0 0.0
    %1260 = vmatpush1.msra.mxu0 0.0
    %1261 = vmatprep.subr.mxu0 0.0
    %1262 = vmatpush1.msra.mxu0 0.0
    %1263 = vmatprep.subr.mxu0 0.0
    %1264 = vmatpush1.msra.mxu0 0.0
    %1265 = vmatprep.subr.mxu0 0.0
    %1266 = vmatpush1.msra.mxu0 0.0
    %1267 = vmatprep.subr.mxu0 0.0
    %1268 = vmatpush1.msra.mxu0 0.0
    %1269 = vmatprep.subr.mxu0 0.0
    %1270 = vmatpush1.msra.mxu0 0.0
    %1271 = vmatprep.subr.mxu0 0.0
    %1272 = vmatpush1.msra.mxu0 0.0
    %1273 = vmatprep.subr.mxu0 0.0
    %1274 = vmatpush1.msra.mxu0 0.0
    %1275 = vmatprep.subr.mxu0 0.0
    %1276 = vmatpush1.msra.mxu0 0.0
    %1277 = vmatprep.subr.mxu0 0.0
    %1278 = vmatpush1.msra.mxu0 0.0
    %1279 = vmatprep.mubr.f32.mxu0 0.0
    %1280 = vmatmul.mubr.f32.gmra.mrb[0].mxu0 %v1135
    %v1281 = vpop.f32.mrb[0].mxu0
    %v1282 = vadd.f32 0.0, %v1281
    %v1283 = vpop.f32.mrb[0].mxu0
    %1284 = vdwg.mxu0
    %v1285 = vadd.f32 %v1141, %v1211
    %v1286 = vxor.u32 %v1285, 2147483648
    %v1287 = vmul.f32 %v1286, 1.442695
    %v1288 = vpow.pop %v1287
    %v1289 = vadd.f32 %v1288, 1.0
    %v1290 = vrcp.pop %v1289
    %v1291 = vmul.f32 1.0, %v1290
    %v1292 = vadd.f32 %v1142, %v1213
    %v1293 = vxor.u32 %v1292, 2147483648
    %v1294 = vmul.f32 %v1293, 1.442695
    %v1295 = vpow.pop %v1294
    %v1296 = vadd.f32 %v1295, 1.0
    %v1297 = vrcp.pop %v1296
    %v1298 = vmul.f32 1.0, %v1297
    %v1299 = vadd.f32 %v1282, %v614
    %v1300 = vmul.f32 %v1291, %v1299
    %v1301 = vadd.f32 %v1143, %v1300
    %v1302 = vtanh.pop %v1301
    %v1303 = vsub.f32 1.0, %v1298
    %v1304 = vmul.f32 %v1303, %v1302
    %v1305 = vmul.f32 %v1298, %v1135
    %v1306 = vadd.f32 %v1304, %v1305
    %s1307 = scalar_lea.vmem [#allocation11], 32
    %1308 = vst [vmem:[%s1307] sm:$0xff] %v1306
    %s1309 = smul.u32 5, 3
    %s1310 = smul.addr %s1309, 8
    %s1311 = scalar_lea.vmem [#allocation2], %s1310
    %v1312 = vld [vmem:[%s1311] sm:$0xff]
    %v1313 = vld [vmem:[%s1311 + $0x8] sm:$0xff]
    %v1314 = vld [vmem:[%s1311 + $0x10] sm:$0xff]
    %1315 = vmatprep.subr.mxu0 %v401
    %1316 = vmatpush1.msra.mxu0 %v400
    %1317 = vmatprep.subr.mxu0 %v404
    %1318 = vmatpush1.msra.mxu0 %v403
    %1319 = vmatprep.subr.mxu0 %v407
    %1320 = vmatpush1.msra.mxu0 %v406
    %1321 = vmatprep.subr.mxu0 %v410
    %1322 = vmatpush1.msra.mxu0 %v409
    %1323 = vmatprep.subr.mxu0 %v413
    %1324 = vmatpush1.msra.mxu0 %v412
    %1325 = vmatprep.subr.mxu0 %v416
    %1326 = vmatpush1.msra.mxu0 %v415
    %1327 = vmatprep.subr.mxu0 %v419
    %1328 = vmatpush1.msra.mxu0 %v418
    %1329 = vmatprep.subr.mxu0 %v422
    %1330 = vmatpush1.msra.mxu0 %v421
    %1331 = vmatprep.subr.mxu0 %v425
    %1332 = vmatpush1.msra.mxu0 %v424
    %1333 = vmatprep.subr.mxu0 %v428
    %1334 = vmatpush1.msra.mxu0 %v427
    %1335 = vmatprep.subr.mxu0 %v431
    %1336 = vmatpush1.msra.mxu0 %v430
    %1337 = vmatprep.subr.mxu0 %v434
    %1338 = vmatpush1.msra.mxu0 %v433
    %1339 = vmatprep.subr.mxu0 %v437
    %1340 = vmatpush1.msra.mxu0 %v436
    %1341 = vmatprep.subr.mxu0 %v440
    %1342 = vmatpush1.msra.mxu0 %v439
    %1343 = vmatprep.subr.mxu0 %v443
    %1344 = vmatpush1.msra.mxu0 %v442
    %1345 = vmatprep.subr.mxu0 %v446
    %1346 = vmatpush1.msra.mxu0 %v445
    %1347 = vmatprep.subr.mxu0 0.0
    %1348 = vmatpush1.msra.mxu0 0.0
    %1349 = vmatprep.subr.mxu0 0.0
    %1350 = vmatpush1.msra.mxu0 0.0
    %1351 = vmatprep.subr.mxu0 0.0
    %1352 = vmatpush1.msra.mxu0 0.0
    %1353 = vmatprep.subr.mxu0 0.0
    %1354 = vmatpush1.msra.mxu0 0.0
    %1355 = vmatprep.subr.mxu0 0.0
    %1356 = vmatpush1.msra.mxu0 0.0
    %1357 = vmatprep.subr.mxu0 0.0
    %1358 = vmatpush1.msra.mxu0 0.0
    %1359 = vmatprep.subr.mxu0 0.0
    %1360 = vmatpush1.msra.mxu0 0.0
    %1361 = vmatprep.subr.mxu0 0.0
    %1362 = vmatpush1.msra.mxu0 0.0
    %1363 = vmatprep.subr.mxu0 0.0
    %1364 = vmatpush1.msra.mxu0 0.0
    %1365 = vmatprep.subr.mxu0 0.0
    %1366 = vmatpush1.msra.mxu0 0.0
    %1367 = vmatprep.subr.mxu0 0.0
    %1368 = vmatpush1.msra.mxu0 0.0
    %1369 = vmatprep.subr.mxu0 0.0
    %1370 = vmatpush1.msra.mxu0 0.0
    %1371 = vmatprep.subr.mxu0 0.0
    %1372 = vmatpush1.msra.mxu0 0.0
    %1373 = vmatprep.subr.mxu0 0.0
    %1374 = vmatpush1.msra.mxu0 0.0
    %1375 = vmatprep.subr.mxu0 0.0
    %1376 = vmatpush1.msra.mxu0 0.0
    %1377 = vmatprep.subr.mxu0 0.0
    %1378 = vmatpush1.msra.mxu0 0.0
    %1379 = vmatprep.mubr.f32.mxu0 0.0
    %1380 = vmatmul.mubr.f32.gmra.mrb[0].mxu0 %v1306
    %v1381 = vpop.f32.mrb[0].mxu0
    %v1382 = vadd.f32 0.0, %v1381
    %v1383 = vpop.f32.mrb[0].mxu0
    %v1384 = vadd.f32 0.0, %v1383
    %1385 = vdwg.mxu0
    %1386 = vmatprep.subr.mxu0 0.0
    %1387 = vmatpush1.msra.mxu0 %v402
    %1388 = vmatprep.subr.mxu0 0.0
    %1389 = vmatpush1.msra.mxu0 %v405
    %1390 = vmatprep.subr.mxu0 0.0
    %1391 = vmatpush1.msra.mxu0 %v408
    %1392 = vmatprep.subr.mxu0 0.0
    %1393 = vmatpush1.msra.mxu0 %v411
    %1394 = vmatprep.subr.mxu0 0.0
    %1395 = vmatpush1.msra.mxu0 %v414
    %1396 = vmatprep.subr.mxu0 0.0
    %1397 = vmatpush1.msra.mxu0 %v417
    %1398 = vmatprep.subr.mxu0 0.0
    %1399 = vmatpush1.msra.mxu0 %v420
    %1400 = vmatprep.subr.mxu0 0.0
    %1401 = vmatpush1.msra.mxu0 %v423
    %1402 = vmatprep.subr.mxu0 0.0
    %1403 = vmatpush1.msra.mxu0 %v426
    %1404 = vmatprep.subr.mxu0 0.0
    %1405 = vmatpush1.msra.mxu0 %v429
    %1406 = vmatprep.subr.mxu0 0.0
    %1407 = vmatpush1.msra.mxu0 %v432
    %1408 = vmatprep.subr.mxu0 0.0
    %1409 = vmatpush1.msra.mxu0 %v435
    %1410 = vmatprep.subr.mxu0 0.0
    %1411 = vmatpush1.msra.mxu0 %v438
    %1412 = vmatprep.subr.mxu0 0.0
    %1413 = vmatpush1.msra.mxu0 %v441
    %1414 = vmatprep.subr.mxu0 0.0
    %1415 = vmatpush1.msra.mxu0 %v444
    %1416 = vmatprep.subr.mxu0 0.0
    %1417 = vmatpush1.msra.mxu0 %v447
    %1418 = vmatprep.subr.mxu0 0.0
    %1419 = vmatpush1.msra.mxu0 0.0
    %1420 = vmatprep.subr.mxu0 0.0
    %1421 = vmatpush1.msra.mxu0 0.0
    %1422 = vmatprep.subr.mxu0 0.0
    %1423 = vmatpush1.msra.mxu0 0.0
    %1424 = vmatprep.subr.mxu0 0.0
    %1425 = vmatpush1.msra.mxu0 0.0
    %1426 = vmatprep.subr.mxu0 0.0
    %1427 = vmatpush1.msra.mxu0 0.0
    %1428 = vmatprep.subr.mxu0 0.0
    %1429 = vmatpush1.msra.mxu0 0.0
    %1430 = vmatprep.subr.mxu0 0.0
    %1431 = vmatpush1.msra.mxu0 0.0
    %1432 = vmatprep.subr.mxu0 0.0
    %1433 = vmatpush1.msra.mxu0 0.0
    %1434 = vmatprep.subr.mxu0 0.0
    %1435 = vmatpush1.msra.mxu0 0.0
    %1436 = vmatprep.subr.mxu0 0.0
    %1437 = vmatpush1.msra.mxu0 0.0
    %1438 = vmatprep.subr.mxu0 0.0
    %1439 = vmatpush1.msra.mxu0 0.0
    %1440 = vmatprep.subr.mxu0 0.0
    %1441 = vmatpush1.msra.mxu0 0.0
    %1442 = vmatprep.subr.mxu0 0.0
    %1443 = vmatpush1.msra.mxu0 0.0
    %1444 = vmatprep.subr.mxu0 0.0
    %1445 = vmatpush1.msra.mxu0 0.0
    %1446 = vmatprep.subr.mxu0 0.0
    %1447 = vmatpush1.msra.mxu0 0.0
    %1448 = vmatprep.subr.mxu0 0.0
    %1449 = vmatpush1.msra.mxu0 0.0
    %1450 = vmatprep.mubr.f32.mxu0 0.0
    %1451 = vmatmul.mubr.f32.gmra.mrb[0].mxu0 %v1306
    %v1452 = vpop.f32.mrb[0].mxu0
    %v1453 = vadd.f32 0.0, %v1452
    %v1454 = vpop.f32.mrb[0].mxu0
    %1455 = vdwg.mxu0
    %v1456 = vadd.f32 %v1312, %v1382
    %v1457 = vxor.u32 %v1456, 2147483648
    %v1458 = vmul.f32 %v1457, 1.442695
    %v1459 = vpow.pop %v1458
    %v1460 = vadd.f32 %v1459, 1.0
    %v1461 = vrcp.pop %v1460
    %v1462 = vmul.f32 1.0, %v1461
    %v1463 = vadd.f32 %v1313, %v1384
    %v1464 = vxor.u32 %v1463, 2147483648
    %v1465 = vmul.f32 %v1464, 1.442695
    %v1466 = vpow.pop %v1465
    %v1467 = vadd.f32 %v1466, 1.0
    %v1468 = vrcp.pop %v1467
    %v1469 = vmul.f32 1.0, %v1468
    %v1470 = vadd.f32 %v1453, %v614
    %v1471 = vmul.f32 %v1462, %v1470
    %v1472 = vadd.f32 %v1314, %v1471
    %v1473 = vtanh.pop %v1472
    %v1474 = vsub.f32 1.0, %v1469
    %v1475 = vmul.f32 %v1474, %v1473
    %v1476 = vmul.f32 %v1469, %v1306
    %v1477 = vadd.f32 %v1475, %v1476
    %s1478 = scalar_lea.vmem [#allocation11], 40
    %1479 = vst [vmem:[%s1478] sm:$0xff] %v1477
    %s1480 = smul.u32 6, 3
    %s1481 = smul.addr %s1480, 8
    %s1482 = scalar_lea.vmem [#allocation2], %s1481
    %v1483 = vld [vmem:[%s1482] sm:$0xff]
    %v1484 = vld [vmem:[%s1482 + $0x8] sm:$0xff]
    %v1485 = vld [vmem:[%s1482 + $0x10] sm:$0xff]
    %1486 = vmatprep.subr.mxu0 %v401
    %1487 = vmatpush1.msra.mxu0 %v400
    %1488 = vmatprep.subr.mxu0 %v404
    %1489 = vmatpush1.msra.mxu0 %v403
    %1490 = vmatprep.subr.mxu0 %v407
    %1491 = vmatpush1.msra.mxu0 %v406
    %1492 = vmatprep.subr.mxu0 %v410
    %1493 = vmatpush1.msra.mxu0 %v409
    %1494 = vmatprep.subr.mxu0 %v413
    %1495 = vmatpush1.msra.mxu0 %v412
    %1496 = vmatprep.subr.mxu0 %v416
    %1497 = vmatpush1.msra.mxu0 %v415
    %1498 = vmatprep.subr.mxu0 %v419
    %1499 = vmatpush1.msra.mxu0 %v418
    %1500 = vmatprep.subr.mxu0 %v422
    %1501 = vmatpush1.msra.mxu0 %v421
    %1502 = vmatprep.subr.mxu0 %v425
    %1503 = vmatpush1.msra.mxu0 %v424
    %1504 = vmatprep.subr.mxu0 %v428
    %1505 = vmatpush1.msra.mxu0 %v427
    %1506 = vmatprep.subr.mxu0 %v431
    %1507 = vmatpush1.msra.mxu0 %v430
    %1508 = vmatprep.subr.mxu0 %v434
    %1509 = vmatpush1.msra.mxu0 %v433
    %1510 = vmatprep.subr.mxu0 %v437
    %1511 = vmatpush1.msra.mxu0 %v436
    %1512 = vmatprep.subr.mxu0 %v440
    %1513 = vmatpush1.msra.mxu0 %v439
    %1514 = vmatprep.subr.mxu0 %v443
    %1515 = vmatpush1.msra.mxu0 %v442
    %1516 = vmatprep.subr.mxu0 %v446
    %1517 = vmatpush1.msra.mxu0 %v445
    %1518 = vmatprep.subr.mxu0 0.0
    %1519 = vmatpush1.msra.mxu0 0.0
    %1520 = vmatprep.subr.mxu0 0.0
    %1521 = vmatpush1.msra.mxu0 0.0
    %1522 = vmatprep.subr.mxu0 0.0
    %1523 = vmatpush1.msra.mxu0 0.0
    %1524 = vmatprep.subr.mxu0 0.0
    %1525 = vmatpush1.msra.mxu0 0.0
    %1526 = vmatprep.subr.mxu0 0.0
    %1527 = vmatpush1.msra.mxu0 0.0
    %1528 = vmatprep.subr.mxu0 0.0
    %1529 = vmatpush1.msra.mxu0 0.0
    %1530 = vmatprep.subr.mxu0 0.0
    %1531 = vmatpush1.msra.mxu0 0.0
    %1532 = vmatprep.subr.mxu0 0.0
    %1533 = vmatpush1.msra.mxu0 0.0
    %1534 = vmatprep.subr.mxu0 0.0
    %1535 = vmatpush1.msra.mxu0 0.0
    %1536 = vmatprep.subr.mxu0 0.0
    %1537 = vmatpush1.msra.mxu0 0.0
    %1538 = vmatprep.subr.mxu0 0.0
    %1539 = vmatpush1.msra.mxu0 0.0
    %1540 = vmatprep.subr.mxu0 0.0
    %1541 = vmatpush1.msra.mxu0 0.0
    %1542 = vmatprep.subr.mxu0 0.0
    %1543 = vmatpush1.msra.mxu0 0.0
    %1544 = vmatprep.subr.mxu0 0.0
    %1545 = vmatpush1.msra.mxu0 0.0
    %1546 = vmatprep.subr.mxu0 0.0
    %1547 = vmatpush1.msra.mxu0 0.0
    %1548 = vmatprep.subr.mxu0 0.0
    %1549 = vmatpush1.msra.mxu0 0.0
    %1550 = vmatprep.mubr.f32.mxu0 0.0
    %1551 = vmatmul.mubr.f32.gmra.mrb[0].mxu0 %v1477
    %v1552 = vpop.f32.mrb[0].mxu0
    %v1553 = vadd.f32 0.0, %v1552
    %v1554 = vpop.f32.mrb[0].mxu0
    %v1555 = vadd.f32 0.0, %v1554
    %1556 = vdwg.mxu0
    %1557 = vmatprep.subr.mxu0 0.0
    %1558 = vmatpush1.msra.mxu0 %v402
    %1559 = vmatprep.subr.mxu0 0.0
    %1560 = vmatpush1.msra.mxu0 %v405
    %1561 = vmatprep.subr.mxu0 0.0
    %1562 = vmatpush1.msra.mxu0 %v408
    %1563 = vmatprep.subr.mxu0 0.0
    %1564 = vmatpush1.msra.mxu0 %v411
    %1565 = vmatprep.subr.mxu0 0.0
    %1566 = vmatpush1.msra.mxu0 %v414
    %1567 = vmatprep.subr.mxu0 0.0
    %1568 = vmatpush1.msra.mxu0 %v417
    %1569 = vmatprep.subr.mxu0 0.0
    %1570 = vmatpush1.msra.mxu0 %v420
    %1571 = vmatprep.subr.mxu0 0.0
    %1572 = vmatpush1.msra.mxu0 %v423
    %1573 = vmatprep.subr.mxu0 0.0
    %1574 = vmatpush1.msra.mxu0 %v426
    %1575 = vmatprep.subr.mxu0 0.0
    %1576 = vmatpush1.msra.mxu0 %v429
    %1577 = vmatprep.subr.mxu0 0.0
    %1578 = vmatpush1.msra.mxu0 %v432
    %1579 = vmatprep.subr.mxu0 0.0
    %1580 = vmatpush1.msra.mxu0 %v435
    %1581 = vmatprep.subr.mxu0 0.0
    %1582 = vmatpush1.msra.mxu0 %v438
    %1583 = vmatprep.subr.mxu0 0.0
    %1584 = vmatpush1.msra.mxu0 %v441
    %1585 = vmatprep.subr.mxu0 0.0
    %1586 = vmatpush1.msra.mxu0 %v444
    %1587 = vmatprep.subr.mxu0 0.0
    %1588 = vmatpush1.msra.mxu0 %v447
    %1589 = vmatprep.subr.mxu0 0.0
    %1590 = vmatpush1.msra.mxu0 0.0
    %1591 = vmatprep.subr.mxu0 0.0
    %1592 = vmatpush1.msra.mxu0 0.0
    %1593 = vmatprep.subr.mxu0 0.0
    %1594 = vmatpush1.msra.mxu0 0.0
    %1595 = vmatprep.subr.mxu0 0.0
    %1596 = vmatpush1.msra.mxu0 0.0
    %1597 = vmatprep.subr.mxu0 0.0
    %1598 = vmatpush1.msra.mxu0 0.0
    %1599 = vmatprep.subr.mxu0 0.0
    %1600 = vmatpush1.msra.mxu0 0.0
    %1601 = vmatprep.subr.mxu0 0.0
    %1602 = vmatpush1.msra.mxu0 0.0
    %1603 = vmatprep.subr.mxu0 0.0
    %1604 = vmatpush1.msra.mxu0 0.0
    %1605 = vmatprep.subr.mxu0 0.0
    %1606 = vmatpush1.msra.mxu0 0.0
    %1607 = vmatprep.subr.mxu0 0.0
    %1608 = vmatpush1.msra.mxu0 0.0
    %1609 = vmatprep.subr.mxu0 0.0
    %1610 = vmatpush1.msra.mxu0 0.0
    %1611 = vmatprep.subr.mxu0 0.0
    %1612 = vmatpush1.msra.mxu0 0.0
    %1613 = vmatprep.subr.mxu0 0.0
    %1614 = vmatpush1.msra.mxu0 0.0
    %1615 = vmatprep.subr.mxu0 0.0
    %1616 = vmatpush1.msra.mxu0 0.0
    %1617 = vmatprep.subr.mxu0 0.0
    %1618 = vmatpush1.msra.mxu0 0.0
    %1619 = vmatprep.subr.mxu0 0.0
    %1620 = vmatpush1.msra.mxu0 0.0
    %1621 = vmatprep.mubr.f32.mxu0 0.0
    %1622 = vmatmul.mubr.f32.gmra.mrb[0].mxu0 %v1477
    %v1623 = vpop.f32.mrb[0].mxu0
    %v1624 = vadd.f32 0.0, %v1623
    %v1625 = vpop.f32.mrb[0].mxu0
    %1626 = vdwg.mxu0
    %v1627 = vadd.f32 %v1483, %v1553
    %v1628 = vxor.u32 %v1627, 2147483648
    %v1629 = vmul.f32 %v1628, 1.442695
    %v1630 = vpow.pop %v1629
    %v1631 = vadd.f32 %v1630, 1.0
    %v1632 = vrcp.pop %v1631
    %v1633 = vmul.f32 1.0, %v1632
    %v1634 = vadd.f32 %v1484, %v1555
    %v1635 = vxor.u32 %v1634, 2147483648
    %v1636 = vmul.f32 %v1635, 1.442695
    %v1637 = vpow.pop %v1636
    %v1638 = vadd.f32 %v1637, 1.0
    %v1639 = vrcp.pop %v1638
    %v1640 = vmul.f32 1.0, %v1639
    %v1641 = vadd.f32 %v1624, %v614
    %v1642 = vmul.f32 %v1633, %v1641
    %v1643 = vadd.f32 %v1485, %v1642
    %v1644 = vtanh.pop %v1643
    %v1645 = vsub.f32 1.0, %v1640
    %v1646 = vmul.f32 %v1645, %v1644
    %v1647 = vmul.f32 %v1640, %v1477
    %v1648 = vadd.f32 %v1646, %v1647
    %s1649 = scalar_lea.vmem [#allocation11], 48
    %1650 = vst [vmem:[%s1649] sm:$0xff] %v1648
    %s1651 = smul.u32 7, 3
    %s1652 = smul.addr %s1651, 8
    %s1653 = scalar_lea.vmem [#allocation2], %s1652
    %v1654 = vld [vmem:[%s1653] sm:$0xff]
    %v1655 = vld [vmem:[%s1653 + $0x8] sm:$0xff]
    %v1656 = vld [vmem:[%s1653 + $0x10] sm:$0xff]
    %1657 = vmatprep.subr.mxu0 %v401
    %1658 = vmatpush1.msra.mxu0 %v400
    %1659 = vmatprep.subr.mxu0 %v404
    %1660 = vmatpush1.msra.mxu0 %v403
    %1661 = vmatprep.subr.mxu0 %v407
    %1662 = vmatpush1.msra.mxu0 %v406
    %1663 = vmatprep.subr.mxu0 %v410
    %1664 = vmatpush1.msra.mxu0 %v409
    %1665 = vmatprep.subr.mxu0 %v413
    %1666 = vmatpush1.msra.mxu0 %v412
    %1667 = vmatprep.subr.mxu0 %v416
    %1668 = vmatpush1.msra.mxu0 %v415
    %1669 = vmatprep.subr.mxu0 %v419
    %1670 = vmatpush1.msra.mxu0 %v418
    %1671 = vmatprep.subr.mxu0 %v422
    %1672 = vmatpush1.msra.mxu0 %v421
    %1673 = vmatprep.subr.mxu0 %v425
    %1674 = vmatpush1.msra.mxu0 %v424
    %1675 = vmatprep.subr.mxu0 %v428
    %1676 = vmatpush1.msra.mxu0 %v427
    %1677 = vmatprep.subr.mxu0 %v431
    %1678 = vmatpush1.msra.mxu0 %v430
    %1679 = vmatprep.subr.mxu0 %v434
    %1680 = vmatpush1.msra.mxu0 %v433
    %1681 = vmatprep.subr.mxu0 %v437
    %1682 = vmatpush1.msra.mxu0 %v436
    %1683 = vmatprep.subr.mxu0 %v440
    %1684 = vmatpush1.msra.mxu0 %v439
    %1685 = vmatprep.subr.mxu0 %v443
    %1686 = vmatpush1.msra.mxu0 %v442
    %1687 = vmatprep.subr.mxu0 %v446
    %1688 = vmatpush1.msra.mxu0 %v445
    %1689 = vmatprep.subr.mxu0 0.0
    %1690 = vmatpush1.msra.mxu0 0.0
    %1691 = vmatprep.subr.mxu0 0.0
    %1692 = vmatpush1.msra.mxu0 0.0
    %1693 = vmatprep.subr.mxu0 0.0
    %1694 = vmatpush1.msra.mxu0 0.0
    %1695 = vmatprep.subr.mxu0 0.0
    %1696 = vmatpush1.msra.mxu0 0.0
    %1697 = vmatprep.subr.mxu0 0.0
    %1698 = vmatpush1.msra.mxu0 0.0
    %1699 = vmatprep.subr.mxu0 0.0
    %1700 = vmatpush1.msra.mxu0 0.0
    %1701 = vmatprep.subr.mxu0 0.0
    %1702 = vmatpush1.msra.mxu0 0.0
    %1703 = vmatprep.subr.mxu0 0.0
    %1704 = vmatpush1.msra.mxu0 0.0
    %1705 = vmatprep.subr.mxu0 0.0
    %1706 = vmatpush1.msra.mxu0 0.0
    %1707 = vmatprep.subr.mxu0 0.0
    %1708 = vmatpush1.msra.mxu0 0.0
    %1709 = vmatprep.subr.mxu0 0.0
    %1710 = vmatpush1.msra.mxu0 0.0
    %1711 = vmatprep.subr.mxu0 0.0
    %1712 = vmatpush1.msra.mxu0 0.0
    %1713 = vmatprep.subr.mxu0 0.0
    %1714 = vmatpush1.msra.mxu0 0.0
    %1715 = vmatprep.subr.mxu0 0.0
    %1716 = vmatpush1.msra.mxu0 0.0
    %1717 = vmatprep.subr.mxu0 0.0
    %1718 = vmatpush1.msra.mxu0 0.0
    %1719 = vmatprep.subr.mxu0 0.0
    %1720 = vmatpush1.msra.mxu0 0.0
    %1721 = vmatprep.mubr.f32.mxu0 0.0
    %1722 = vmatmul.mubr.f32.gmra.mrb[0].mxu0 %v1648
    %v1723 = vpop.f32.mrb[0].mxu0
    %v1724 = vadd.f32 0.0, %v1723
    %v1725 = vpop.f32.mrb[0].mxu0
    %v1726 = vadd.f32 0.0, %v1725
    %1727 = vdwg.mxu0
    %1728 = vmatprep.subr.mxu0 0.0
    %1729 = vmatpush1.msra.mxu0 %v402
    %1730 = vmatprep.subr.mxu0 0.0
    %1731 = vmatpush1.msra.mxu0 %v405
    %1732 = vmatprep.subr.mxu0 0.0
    %1733 = vmatpush1.msra.mxu0 %v408
    %1734 = vmatprep.subr.mxu0 0.0
    %1735 = vmatpush1.msra.mxu0 %v411
    %1736 = vmatprep.subr.mxu0 0.0
    %1737 = vmatpush1.msra.mxu0 %v414
    %1738 = vmatprep.subr.mxu0 0.0
    %1739 = vmatpush1.msra.mxu0 %v417
    %1740 = vmatprep.subr.mxu0 0.0
    %1741 = vmatpush1.msra.mxu0 %v420
    %1742 = vmatprep.subr.mxu0 0.0
    %1743 = vmatpush1.msra.mxu0 %v423
    %1744 = vmatprep.subr.mxu0 0.0
    %1745 = vmatpush1.msra.mxu0 %v426
    %1746 = vmatprep.subr.mxu0 0.0
    %1747 = vmatpush1.msra.mxu0 %v429
    %1748 = vmatprep.subr.mxu0 0.0
    %1749 = vmatpush1.msra.mxu0 %v432
    %1750 = vmatprep.subr.mxu0 0.0
    %1751 = vmatpush1.msra.mxu0 %v435
    %1752 = vmatprep.subr.mxu0 0.0
    %1753 = vmatpush1.msra.mxu0 %v438
    %1754 = vmatprep.subr.mxu0 0.0
    %1755 = vmatpush1.msra.mxu0 %v441
    %1756 = vmatprep.subr.mxu0 0.0
    %1757 = vmatpush1.msra.mxu0 %v444
    %1758 = vmatprep.subr.mxu0 0.0
    %1759 = vmatpush1.msra.mxu0 %v447
    %1760 = vmatprep.subr.mxu0 0.0
    %1761 = vmatpush1.msra.mxu0 0.0
    %1762 = vmatprep.subr.mxu0 0.0
    %1763 = vmatpush1.msra.mxu0 0.0
    %1764 = vmatprep.subr.mxu0 0.0
    %1765 = vmatpush1.msra.mxu0 0.0
    %1766 = vmatprep.subr.mxu0 0.0
    %1767 = vmatpush1.msra.mxu0 0.0
    %1768 = vmatprep.subr.mxu0 0.0
    %1769 = vmatpush1.msra.mxu0 0.0
    %1770 = vmatprep.subr.mxu0 0.0
    %1771 = vmatpush1.msra.mxu0 0.0
    %1772 = vmatprep.subr.mxu0 0.0
    %1773 = vmatpush1.msra.mxu0 0.0
    %1774 = vmatprep.subr.mxu0 0.0
    %1775 = vmatpush1.msra.mxu0 0.0
    %1776 = vmatprep.subr.mxu0 0.0
    %1777 = vmatpush1.msra.mxu0 0.0
    %1778 = vmatprep.subr.mxu0 0.0
    %1779 = vmatpush1.msra.mxu0 0.0
    %1780 = vmatprep.subr.mxu0 0.0
    %1781 = vmatpush1.msra.mxu0 0.0
    %1782 = vmatprep.subr.mxu0 0.0
    %1783 = vmatpush1.msra.mxu0 0.0
    %1784 = vmatprep.subr.mxu0 0.0
    %1785 = vmatpush1.msra.mxu0 0.0
    %1786 = vmatprep.subr.mxu0 0.0
    %1787 = vmatpush1.msra.mxu0 0.0
    %1788 = vmatprep.subr.mxu0 0.0
    %1789 = vmatpush1.msra.mxu0 0.0
    %1790 = vmatprep.subr.mxu0 0.0
    %1791 = vmatpush1.msra.mxu0 0.0
    %1792 = vmatprep.mubr.f32.mxu0 0.0
    %1793 = vmatmul.mubr.f32.gmra.mrb[0].mxu0 %v1648
    %v1794 = vpop.f32.mrb[0].mxu0
    %v1795 = vadd.f32 0.0, %v1794
    %v1796 = vpop.f32.mrb[0].mxu0
    %1797 = vdwg.mxu0
    %v1798 = vadd.f32 %v1654, %v1724
    %v1799 = vxor.u32 %v1798, 2147483648
    %v1800 = vmul.f32 %v1799, 1.442695
    %v1801 = vpow.pop %v1800
    %v1802 = vadd.f32 %v1801, 1.0
    %v1803 = vrcp.pop %v1802
    %v1804 = vmul.f32 1.0, %v1803
    %v1805 = vadd.f32 %v1655, %v1726
    %v1806 = vxor.u32 %v1805, 2147483648
    %v1807 = vmul.f32 %v1806, 1.442695
    %v1808 = vpow.pop %v1807
    %v1809 = vadd.f32 %v1808, 1.0
    %v1810 = vrcp.pop %v1809
    %v1811 = vmul.f32 1.0, %v1810
    %v1812 = vadd.f32 %v1795, %v614
    %v1813 = vmul.f32 %v1804, %v1812
    %v1814 = vadd.f32 %v1656, %v1813
    %v1815 = vtanh.pop %v1814
    %v1816 = vsub.f32 1.0, %v1811
    %v1817 = vmul.f32 %v1816, %v1815
    %v1818 = vmul.f32 %v1811, %v1648
    %v1819 = vadd.f32 %v1817, %v1818
    %s1820 = scalar_lea.vmem [#allocation11], 56
    %1821 = vst [vmem:[%s1820] sm:$0xff] %v1819
    %v1822 = vld [vmem:[#allocation9] sm:$0xff]
    %v1823 = vld [vmem:[#allocation9 + $0x8] sm:$0xff]
    %v1824 = vld [vmem:[#allocation9 + $0x10] sm:$0xff]
    %v1825 = vld [vmem:[#allocation9 + $0x18] sm:$0xff]
    %v1826 = vld [vmem:[#allocation9 + $0x20] sm:$0xff]
    %v1827 = vld [vmem:[#allocation9 + $0x28] sm:$0xff]
    %v1828 = vld [vmem:[#allocation9 + $0x30] sm:$0xff]
    %v1829 = vld [vmem:[#allocation9 + $0x38] sm:$0xff]
    %v1830 = vld [vmem:[#allocation9 + $0x40] sm:$0xff]
    %v1831 = vld [vmem:[#allocation9 + $0x48] sm:$0xff]
    %v1832 = vld [vmem:[#allocation9 + $0x50] sm:$0xff]
    %v1833 = vld [vmem:[#allocation9 + $0x58] sm:$0xff]
    %v1834 = vld [vmem:[#allocation9 + $0x60] sm:$0xff]
    %v1835 = vld [vmem:[#allocation9 + $0x68] sm:$0xff]
    %v1836 = vld [vmem:[#allocation9 + $0x70] sm:$0xff]
    %v1837 = vld [vmem:[#allocation9 + $0x78] sm:$0xff]
    %v1838 = vld [vmem:[%s6] sm:$0x1]
    %v1840 = vlaneseq
    %v1841 = vshrl.u32 %v1840, 7
    %v1842 = vsub.s32 0, %v1841
    %v1843 = vrot.slane %v1838, %v1842
    %1845 = vmatprep.subr.mxu0 0.0
    %1846 = vmatpush1.msra.mxu0 %v1822
    %1847 = vmatprep.subr.mxu0 0.0
    %1848 = vmatpush1.msra.mxu0 %v1823
    %1849 = vmatprep.subr.mxu0 0.0
    %1850 = vmatpush1.msra.mxu0 %v1824
    %1851 = vmatprep.subr.mxu0 0.0
    %1852 = vmatpush1.msra.mxu0 %v1825
    %1853 = vmatprep.subr.mxu0 0.0
    %1854 = vmatpush1.msra.mxu0 %v1826
    %1855 = vmatprep.subr.mxu0 0.0
    %1856 = vmatpush1.msra.mxu0 %v1827
    %1857 = vmatprep.subr.mxu0 0.0
    %1858 = vmatpush1.msra.mxu0 %v1828
    %1859 = vmatprep.subr.mxu0 0.0
    %1860 = vmatpush1.msra.mxu0 %v1829
    %1861 = vmatprep.subr.mxu0 0.0
    %1862 = vmatpush1.msra.mxu0 %v1830
    %1863 = vmatprep.subr.mxu0 0.0
    %1864 = vmatpush1.msra.mxu0 %v1831
    %1865 = vmatprep.subr.mxu0 0.0
    %1866 = vmatpush1.msra.mxu0 %v1832
    %1867 = vmatprep.subr.mxu0 0.0
    %1868 = vmatpush1.msra.mxu0 %v1833
    %1869 = vmatprep.subr.mxu0 0.0
    %1870 = vmatpush1.msra.mxu0 %v1834
    %1871 = vmatprep.subr.mxu0 0.0
    %1872 = vmatpush1.msra.mxu0 %v1835
    %1873 = vmatprep.subr.mxu0 0.0
    %1874 = vmatpush1.msra.mxu0 %v1836
    %1875 = vmatprep.subr.mxu0 0.0
    %1876 = vmatpush1.msra.mxu0 %v1837
    %1877 = vmatprep.subr.mxu0 0.0
    %1878 = vmatpush1.msra.mxu0 0.0
    %1879 = vmatprep.subr.mxu0 0.0
    %1880 = vmatpush1.msra.mxu0 0.0
    %1881 = vmatprep.subr.mxu0 0.0
    %1882 = vmatpush1.msra.mxu0 0.0
    %1883 = vmatprep.subr.mxu0 0.0
    %1884 = vmatpush1.msra.mxu0 0.0
    %1885 = vmatprep.subr.mxu0 0.0
    %1886 = vmatpush1.msra.mxu0 0.0
    %1887 = vmatprep.subr.mxu0 0.0
    %1888 = vmatpush1.msra.mxu0 0.0
    %1889 = vmatprep.subr.mxu0 0.0
    %1890 = vmatpush1.msra.mxu0 0.0
    %1891 = vmatprep.subr.mxu0 0.0
    %1892 = vmatpush1.msra.mxu0 0.0
    %1893 = vmatprep.subr.mxu0 0.0
    %1894 = vmatpush1.msra.mxu0 0.0
    %1895 = vmatprep.subr.mxu0 0.0
    %1896 = vmatpush1.msra.mxu0 0.0
    %1897 = vmatprep.subr.mxu0 0.0
    %1898 = vmatpush1.msra.mxu0 0.0
    %1899 = vmatprep.subr.mxu0 0.0
    %1900 = vmatpush1.msra.mxu0 0.0
    %1901 = vmatprep.subr.mxu0 0.0
    %1902 = vmatpush1.msra.mxu0 0.0
    %1903 = vmatprep.subr.mxu0 0.0
    %1904 = vmatpush1.msra.mxu0 0.0
    %1905 = vmatprep.subr.mxu0 0.0
    %1906 = vmatpush1.msra.mxu0 0.0
    %1907 = vmatprep.subr.mxu0 0.0
    %1908 = vmatpush1.msra.mxu0 0.0
    %1909 = vmatprep.mubr.f32.mxu0 0.0
    %1910 = vmatmul.mubr.f32.gmra.mrb[0].mxu0 %v1819
    %v1911 = vpop.f32.mrb[0].mxu0
    %v1912 = vadd.f32 %v1843, %v1911
    %v1913 = vpop.f32.mrb[0].mxu0
    %1914 = vdwg.mxu0
    %1915 = vst [vmem:[#allocation12] sm:$0xff] %v1912
    // Predicated region
    $region46: #{tpu_custom_call.1} parent=1 // pred_check
      _
    $region47: #{tpu_custom_call.1} parent=1 // pred_check_branch
      %1917 = sbr.rel (0) target = $region49
    $region48: #{tpu_custom_call.1} parent=1 // pred_region
      %s1919 = ssub.s32 1024, 1024
      %1920 = vsyncadd [#allocation5], %s1919
      %s1921 = sshll.u32 [#allocation11], 4
      %s1922 = int_to_ptr.vmem [resolvable:$true] %s1921
      %1927 = dma.vmem_to_hbm [thread:$0]  %s1922, 1024, %s7, [#allocation5], 128, 128, 8
    $region49: #{tpu_custom_call.1} parent=1 // pred_fallthru
      _
    // Predicated region
    $region50: #{tpu_custom_call.1} parent=1 // pred_check
      _
    $region51: #{tpu_custom_call.1} parent=1 // pred_check_branch
      %1929 = sbr.rel (0) target = $region53
    $region52: #{tpu_custom_call.1} parent=1 // pred_region
      %s1931 = ssub.s32 128, 128
      %1932 = vsyncadd [#allocation13], %s1931
      %s1934 = sshll.u32 [#allocation12], 4
      %s1935 = int_to_ptr.vmem [resolvable:$true] %s1934
      %1937 = dma.vmem_to_hbm [thread:$0]  %s1935, 128, %s8, [#allocation13]
    $region53: #{tpu_custom_call.1} parent=1 // pred_fallthru
      _
    // Predicated region
    $region54: #{tpu_custom_call.1} parent=1 // pred_check
      _
    $region55: #{tpu_custom_call.1} parent=1 // pred_check_branch
      %1939 = sbr.rel (0) target = $region57
    $region56: #{tpu_custom_call.1} parent=1 // pred_region
      %1940 = dma.done [#allocation5], 1024
    $region57: #{tpu_custom_call.1} parent=1 // pred_fallthru
      _
    // Predicated region
    $region58: #{tpu_custom_call.1} parent=1 // pred_check
      _
    $region59: #{tpu_custom_call.1} parent=1 // pred_check_branch
      %1942 = sbr.rel (0) target = $region61
    $region60: #{tpu_custom_call.1} parent=1 // pred_region
      %1943 = dma.done [#allocation13], 128
    $region61: #{tpu_custom_call.1} parent=1 // pred_fallthru
      _
    %1944 = vsyncpa [#allocation4], 1
    %1945 = vsyncpa [#allocation7], 1
    %1946 = vsyncpa [#allocation10], 1
    %1947 = vsyncpa [#allocation5], 1
    %1948 = vsyncpa [#allocation13], 1

</llo_original>
